<compile_context>
chip_gen: v7x
topology: tpu7x:2x2x1
jax: 0.10.0
libtpu: 0.0.40
codegen_flags: <defaults>
</compile_context>

<pallas_src>
import jax
import jax.numpy as jnp
from jax.experimental import pallas as pl
from jax.experimental.pallas import tpu as pltpu


def _make_kernel(H, W, Cin, Hid, Cout, stride, has_expand, use_res, mxu_dtype):
    Ho = (H + 2 - 3) // stride + 1
    Wo = (W + 2 - 3) // stride + 1

    def kernel(x_ref, *refs):
        if has_expand:
            (w1_ref, b1_ref, dw_ref, b2_ref,
             w3_ref, b3_ref, o_ref, pad_ref) = refs
        else:
            (dw_ref, b2_ref, w3_ref, b3_ref, o_ref, pad_ref) = refs

        f32 = jnp.float32
        x = x_ref[...].reshape(H * W, Cin).astype(f32)

        # ---- 1x1 expand conv (BN scale folded into w1) + bias + ReLU6 -------
        if has_expand:
            h = jnp.dot(x.astype(mxu_dtype), w1_ref[...],
                        preferred_element_type=f32)
            h = jnp.clip(h + b1_ref[...], 0.0, 6.0)
        else:
            h = x                              # requires Hid == Cin (asserted)
        h = h.reshape(H, W, Hid)

        # ---- 3x3 depthwise conv, pad=1, stride s (BN scale folded into dw) --
        # Zero only the 1-pixel border of the persistent scratch; the interior
        # is fully overwritten below.  Done every step so results stay correct
        # when the parallel batch axis is split across cores (per-core scratch).
        zrow = jnp.zeros((1, W + 2, Hid), f32)
        zcol = jnp.zeros((H, 1, Hid), f32)
        pad_ref[0:1, :, :] = zrow
        pad_ref[H + 1:H + 2, :, :] = zrow
        pad_ref[1:H + 1, 0:1, :] = zcol
        pad_ref[1:H + 1, W + 1:W + 2, :] = zcol
        pad_ref[1:H + 1, 1:W + 1, :] = h

        dw = dw_ref[...]                       # (3, 3, Hid), f32, BN2-folded

        def tap(ki, kj):
            win = pad_ref[ki:ki + H, kj:kj + W, :]
            if stride == 2:
                # keep only rows/cols that contribute to the strided output
                win = win.reshape(Ho, 2, Wo, 2, Hid)[:, 0, :, 0, :]
            return win

        acc = tap(0, 0) * dw[0, 0]             # first-tap init (no zeros+add)
        for ki in range(3):
            for kj in range(3):
                if ki == 0 and kj == 0:
                    continue
                acc = acc + tap(ki, kj) * dw[ki, kj]

        h2 = jnp.clip(acc + b2_ref[...], 0.0, 6.0)     # (Ho, Wo, Hid)

        # ---- 1x1 projection conv (BN scale folded into w3) + bias -----------
        h2f = h2.reshape(Ho * Wo, Hid)
        out = jnp.dot(h2f.astype(mxu_dtype), w3_ref[...],
                      preferred_element_type=f32)
        out = out + b3_ref[...]

        if use_res:
            out = out + x                      # Cin == Cout, Ho == H, Wo == W

        o_ref[...] = out.reshape(1, Ho, Wo, Cout).astype(o_ref.dtype)

    return kernel, Ho, Wo


def inverted_residual_pallas(x_nchw, params, *, stride, expand_ratio,
                             mxu_dtype=jnp.bfloat16):
    """x_nchw: (N, Cin, H, W) float32. Returns (N, Cout, Ho, Wo) float32."""
    assert stride in (1, 2)
    N, Cin, H, W = x_nchw.shape
    w1, b1, dw, b2, w3, b3 = params
    Hid, Cout = w3.shape
    has_expand = expand_ratio != 1
    if not has_expand:
        assert Hid == Cin, "expand_ratio == 1 requires hidden_dim == inp"
    if stride == 2:
        assert H % 2 == 0 and W % 2 == 0, "stride==2 path requires even H, W"
    use_res = (stride == 1) and (Cin == Cout)

    kernel, Ho, Wo = _make_kernel(H, W, Cin, Hid, Cout, stride,
                                  has_expand, use_res, mxu_dtype)

    x_nhwc = jnp.transpose(x_nchw, (0, 2, 3, 1)).astype(jnp.float32)

    def full(a):
        shape = a.shape
        return pl.BlockSpec(shape, lambda n: (0,) * len(shape))

    inputs = [x_nhwc]
    in_specs = [pl.BlockSpec((1, H, W, Cin), lambda n: (n, 0, 0, 0))]
    if has_expand:
        w1c = w1.astype(mxu_dtype)
        b1c = b1.reshape(1, Hid).astype(jnp.float32)
        inputs += [w1c, b1c]
        in_specs += [full(w1c), full(b1c)]
    dwc = dw.astype(jnp.float32)
    b2c = b2.reshape(1, 1, Hid).astype(jnp.float32)
    w3c = w3.astype(mxu_dtype)
    b3c = b3.reshape(1, Cout).astype(jnp.float32)
    inputs += [dwc, b2c, w3c, b3c]
    in_specs += [full(dwc), full(b2c), full(w3c), full(b3c)]

    out = pl.pallas_call(
        kernel,
        out_shape=jax.ShapeDtypeStruct((N, Ho, Wo, Cout), jnp.float32),
        grid_spec=pltpu.PrefetchScalarGridSpec(
            num_scalar_prefetch=0,
            grid=(N,),
            in_specs=in_specs,
            out_specs=pl.BlockSpec((1, Ho, Wo, Cout), lambda n: (n, 0, 0, 0)),
            scratch_shapes=[pltpu.VMEM((H + 2, W + 2, Hid), jnp.float32)],
        ),
        compiler_params=pltpu.CompilerParams(
            dimension_semantics=("parallel",),
            vmem_limit_bytes=32 * 1024 * 1024,
        ),
    )(*inputs)

    return jnp.transpose(out, (0, 3, 1, 2))


# ----------------------------- parameters ----------------------------------

def _fold_bn(gamma, beta, mean, var, eps=1e-5):
    scale = gamma / jnp.sqrt(var + eps)
    bias = beta - mean * scale
    return scale, bias


def make_params(key, inp, oup, expand_ratio):
    """Random conv weights + eval-mode BN, with BN scales folded into weights."""
    hidden = int(round(inp * expand_ratio))
    ks = jax.random.split(key, 6)
    w1 = 0.1 * jax.random.normal(ks[0], (inp, hidden), jnp.float32)
    dw = 0.1 * jax.random.normal(ks[1], (3, 3, hidden), jnp.float32)
    w3 = 0.1 * jax.random.normal(ks[2], (hidden, oup), jnp.float32)

    def bn(k, c):
        k1, k2, k3, k4 = jax.random.split(k, 4)
        gamma = 1.0 + 0.1 * jax.random.normal(k1, (c,), jnp.float32)
        beta = 0.1 * jax.random.normal(k2, (c,), jnp.float32)
        mean = 0.1 * jax.random.normal(k3, (c,), jnp.float32)
        var = 1.0 + 0.1 * jnp.abs(jax.random.normal(k4, (c,), jnp.float32))
        return _fold_bn(gamma, beta, mean, var)

    s1, b1 = bn(ks[3], hidden)
    s2, b2 = bn(ks[4], hidden)
    s3, b3 = bn(ks[5], oup)

    # conv-BN fold: absorb per-out-channel BN scale into the conv weights.
    w1f = w1 * s1[None, :]
    dwf = dw * s2[None, None, :]
    w3f = w3 * s3[None, :]
    return (w1f, b1, dwf, b2, w3f, b3), hidden


# ----------------------------- reference ------------------------------------

def reference_forward(x_nchw, params, *, stride, expand_ratio,
                      mxu_dtype=jnp.bfloat16):
    """Pure-JAX reference with identical numerics (same BN fold, bf16 matmuls)."""
    w1, b1, dw, b2, w3, b3 = params
    N, Cin, H, W = x_nchw.shape
    Cout = w3.shape[1]
    x = jnp.transpose(x_nchw, (0, 2, 3, 1)).astype(jnp.float32)
    h = x
    if expand_ratio != 1:
        h = jnp.einsum('nhwc,cd->nhwd', h.astype(mxu_dtype), w1.astype(mxu_dtype),
                       preferred_element_type=jnp.float32) + b1
        h = jnp.clip(h, 0.0, 6.0)
    Hid = h.shape[-1]
    Ho = (H + 2 - 3) // stride + 1
    Wo = (W + 2 - 3) // stride + 1
    hp = jnp.pad(h, ((0, 0), (1, 1), (1, 1), (0, 0)))
    acc = jnp.zeros((N, Ho, Wo, Hid), jnp.float32)
    for ki in range(3):
        for kj in range(3):
            win = hp[:, ki:ki + H:stride, kj:kj + W:stride, :]
            acc = acc + win * dw[ki, kj]
    h2 = jnp.clip(acc + b2, 0.0, 6.0)
    out = jnp.einsum('nhwc,cd->nhwd', h2.astype(mxu_dtype), w3.astype(mxu_dtype),
                     preferred_element_type=jnp.float32) + b3
    if stride == 1 and Cin == Cout:
        out = out + x
    return jnp.transpose(out, (0, 3, 1, 2))


# ----------------------------- test ------------------------------------------

if __name__ == "__main__":
    def run_case(key, N, Cin, H, W, oup, stride, expand_ratio):
        kx, kp = jax.random.split(key)
        x = jax.random.normal(kx, (N, Cin, H, W), jnp.float32)
        params, _ = make_params(kp, Cin, oup, expand_ratio)

        y = inverted_residual_pallas(x, params, stride=stride,
                                     expand_ratio=expand_ratio)
        y = jax.block_until_ready(y)

        y_ref = reference_forward(x, params, stride=stride,
                                  expand_ratio=expand_ratio)
        Ho = (H + 2 - 3) // stride + 1
        Wo = (W + 2 - 3) // stride + 1
        assert y.shape == (N, oup, Ho, Wo), y.shape
        assert jnp.allclose(y, y_ref, atol=1e-2, rtol=1e-2), \
            f"max abs err {jnp.max(jnp.abs(y - y_ref))}"

    key = jax.random.PRNGKey(0)
    k1, k2 = jax.random.split(key)
    # residual path (stride=1, inp == oup)
    run_case(k1, N=2, Cin=4, H=16, W=16, oup=4, stride=1, expand_ratio=6)
    # downsampling path (stride=2, no residual)
    run_case(k2, N=2, Cin=4, H=16, W=16, oup=8, stride=2, expand_ratio=6)

    print("KERNEL_OK")
</pallas_src>

<mosaic_0001>
module attributes {stable_mosaic.version = 11 : i64} {
  func.func @kernel(%arg0: i32, %arg1: memref<1x16x16x4xf32, #tpu.memory_space<vmem>>, %arg2: memref<4x24xbf16, #tpu.memory_space<vmem>>, %arg3: memref<1x24xf32, #tpu.memory_space<vmem>>, %arg4: memref<3x3x24xf32, #tpu.memory_space<vmem>>, %arg5: memref<1x1x24xf32, #tpu.memory_space<vmem>>, %arg6: memref<24x4xbf16, #tpu.memory_space<vmem>>, %arg7: memref<1x4xf32, #tpu.memory_space<vmem>>, %arg8: memref<1x16x16x4xf32, #tpu.memory_space<vmem>>, %arg9: memref<18x18x24xf32, #tpu.memory_space<vmem>>) attributes {dimension_semantics = [#tpu.dimension_semantics<parallel>], iteration_bounds = array<i64: 2>, scalar_prefetch = 0 : i64, scratch_operands = 1 : i64, tpu.core_type = #tpu.core_type<tc>, window_params = [{transform_indices = @transform_0, window_bounds = array<i64: 1, 16, 16, 4>}, {pipeline_mode = #tpu.pipeline_mode<synchronous>, transform_indices = @transform_1, window_bounds = array<i64: 4, 24>}, {pipeline_mode = #tpu.pipeline_mode<synchronous>, transform_indices = @transform_2, window_bounds = array<i64: 1, 24>}, {pipeline_mode = #tpu.pipeline_mode<synchronous>, transform_indices = @transform_3, window_bounds = array<i64: 3, 3, 24>}, {pipeline_mode = #tpu.pipeline_mode<synchronous>, transform_indices = @transform_4, window_bounds = array<i64: 1, 1, 24>}, {pipeline_mode = #tpu.pipeline_mode<synchronous>, transform_indices = @transform_5, window_bounds = array<i64: 24, 4>}, {pipeline_mode = #tpu.pipeline_mode<synchronous>, transform_indices = @transform_6, window_bounds = array<i64: 1, 4>}, {transform_indices = @transform_7, window_bounds = array<i64: 1, 16, 16, 4>}]} {
    %c0 = arith.constant 0 : index
    %c0_0 = arith.constant 0 : index
    %c0_1 = arith.constant 0 : index
    %c0_2 = arith.constant 0 : index
    %0 = vector.load %arg1[%c0, %c0_0, %c0_1, %c0_2] : memref<1x16x16x4xf32, #tpu.memory_space<vmem>>, vector<1x16x16x4xf32>
    %1 = vector.shape_cast %0 : vector<1x16x16x4xf32> to vector<256x4xf32>
    %2 = arith.truncf %1 : vector<256x4xf32> to vector<256x4xbf16>
    %c0_3 = arith.constant 0 : index
    %c0_4 = arith.constant 0 : index
    %3 = vector.load %arg2[%c0_3, %c0_4] : memref<4x24xbf16, #tpu.memory_space<vmem>>, vector<4x24xbf16>
    %cst = arith.constant dense<0.000000e+00> : vector<256x24xf32>
    %4 = tpu.matmul %2, %3, %cst {dimension_numbers = #tpu.dot_dimension_numbers<[1], [0], [0], [1], [0, 0, 1, 1], [], []>} : vector<256x4xbf16>, vector<4x24xbf16>, vector<256x24xf32> -> vector<256x24xf32>
    %c0_5 = arith.constant 0 : index
    %c0_6 = arith.constant 0 : index
    %5 = vector.load %arg3[%c0_5, %c0_6] : memref<1x24xf32, #tpu.memory_space<vmem>>, vector<1x24xf32>
    %6 = vector.broadcast %5 : vector<1x24xf32> to vector<256x24xf32>
    %7 = arith.addf %4, %6 : vector<256x24xf32>
    %cst_7 = arith.constant 0.000000e+00 : f32
    %cst_8 = arith.constant 6.000000e+00 : f32
    %8 = vector.broadcast %cst_7 : f32 to vector<256x24xf32>
    %9 = arith.maximumf %8, %7 : vector<256x24xf32>
    %10 = vector.broadcast %cst_8 : f32 to vector<256x24xf32>
    %11 = arith.minimumf %10, %9 : vector<256x24xf32>
    %12 = vector.shape_cast %11 : vector<256x24xf32> to vector<16x16x24xf32>
    %cst_9 = arith.constant 0.000000e+00 : f32
    %13 = vector.broadcast %cst_9 : f32 to vector<1x18x24xf32>
    %cst_10 = arith.constant 0.000000e+00 : f32
    %14 = vector.broadcast %cst_10 : f32 to vector<16x1x24xf32>
    %c0_11 = arith.constant 0 : index
    %c0_12 = arith.constant 0 : index
    %c0_13 = arith.constant 0 : index
    %15 = vector.load %arg9[%c0_11, %c0_12, %c0_13] : memref<18x18x24xf32, #tpu.memory_space<vmem>>, vector<1x18x24xf32>
    tpu.vector_store %arg9[%c0_11, %c0_12, %c0_13], %13 {strides = array<i32>} : memref<18x18x24xf32, #tpu.memory_space<vmem>>, vector<1x18x24xf32>,
    %c17 = arith.constant 17 : index
    %c0_14 = arith.constant 0 : index
    %c0_15 = arith.constant 0 : index
    %16 = vector.load %arg9[%c17, %c0_14, %c0_15] : memref<18x18x24xf32, #tpu.memory_space<vmem>>, vector<1x18x24xf32>
    tpu.vector_store %arg9[%c17, %c0_14, %c0_15], %13 {strides = array<i32>} : memref<18x18x24xf32, #tpu.memory_space<vmem>>, vector<1x18x24xf32>,
    %c1 = arith.constant 1 : index
    %c0_16 = arith.constant 0 : index
    %c0_17 = arith.constant 0 : index
    %17 = vector.load %arg9[%c1, %c0_16, %c0_17] : memref<18x18x24xf32, #tpu.memory_space<vmem>>, vector<16x1x24xf32>
    tpu.vector_store %arg9[%c1, %c0_16, %c0_17], %14 {strides = array<i32>} : memref<18x18x24xf32, #tpu.memory_space<vmem>>, vector<16x1x24xf32>,
    %c1_18 = arith.constant 1 : index
    %c17_19 = arith.constant 17 : index
    %c0_20 = arith.constant 0 : index
    %18 = vector.load %arg9[%c1_18, %c17_19, %c0_20] : memref<18x18x24xf32, #tpu.memory_space<vmem>>, vector<16x1x24xf32>
    tpu.vector_store %arg9[%c1_18, %c17_19, %c0_20], %14 {strides = array<i32>} : memref<18x18x24xf32, #tpu.memory_space<vmem>>, vector<16x1x24xf32>,
    %c1_21 = arith.constant 1 : index
    %c1_22 = arith.constant 1 : index
    %c0_23 = arith.constant 0 : index
    %19 = vector.load %arg9[%c1_21, %c1_22, %c0_23] : memref<18x18x24xf32, #tpu.memory_space<vmem>>, vector<16x16x24xf32>
    tpu.vector_store %arg9[%c1_21, %c1_22, %c0_23], %12 {strides = array<i32>} : memref<18x18x24xf32, #tpu.memory_space<vmem>>, vector<16x16x24xf32>,
    %c0_24 = arith.constant 0 : index
    %c0_25 = arith.constant 0 : index
    %c0_26 = arith.constant 0 : index
    %20 = vector.load %arg4[%c0_24, %c0_25, %c0_26] : memref<3x3x24xf32, #tpu.memory_space<vmem>>, vector<3x3x24xf32>
    %c0_27 = arith.constant 0 : index
    %c0_28 = arith.constant 0 : index
    %c0_29 = arith.constant 0 : index
    %21 = vector.load %arg9[%c0_27, %c0_28, %c0_29] : memref<18x18x24xf32, #tpu.memory_space<vmem>>, vector<16x16x24xf32>
    %22 = vector.extract_strided_slice %20 {offsets = [0, 0, 0], sizes = [1, 1, 24], strides = [1, 1, 1]} : vector<3x3x24xf32> to vector<1x1x24xf32>
    %23 = vector.shape_cast %22 : vector<1x1x24xf32> to vector<24xf32>
    %24 = vector.shape_cast %23 : vector<24xf32> to vector<1x1x24xf32>
    %25 = vector.broadcast %24 : vector<1x1x24xf32> to vector<16x16x24xf32>
    %26 = arith.mulf %21, %25 : vector<16x16x24xf32>
    %c0_30 = arith.constant 0 : index
    %c1_31 = arith.constant 1 : index
    %c0_32 = arith.constant 0 : index
    %27 = vector.load %arg9[%c0_30, %c1_31, %c0_32] : memref<18x18x24xf32, #tpu.memory_space<vmem>>, vector<16x16x24xf32>
    %28 = vector.extract_strided_slice %20 {offsets = [0, 1, 0], sizes = [1, 1, 24], strides = [1, 1, 1]} : vector<3x3x24xf32> to vector<1x1x24xf32>
    %29 = vector.shape_cast %28 : vector<1x1x24xf32> to vector<24xf32>
    %30 = vector.shape_cast %29 : vector<24xf32> to vector<1x1x24xf32>
    %31 = vector.broadcast %30 : vector<1x1x24xf32> to vector<16x16x24xf32>
    %32 = arith.mulf %27, %31 : vector<16x16x24xf32>
    %33 = arith.addf %26, %32 : vector<16x16x24xf32>
    %c0_33 = arith.constant 0 : index
    %c2 = arith.constant 2 : index
    %c0_34 = arith.constant 0 : index
    %34 = vector.load %arg9[%c0_33, %c2, %c0_34] : memref<18x18x24xf32, #tpu.memory_space<vmem>>, vector<16x16x24xf32>
    %35 = vector.extract_strided_slice %20 {offsets = [0, 2, 0], sizes = [1, 1, 24], strides = [1, 1, 1]} : vector<3x3x24xf32> to vector<1x1x24xf32>
    %36 = vector.shape_cast %35 : vector<1x1x24xf32> to vector<24xf32>
    %37 = vector.shape_cast %36 : vector<24xf32> to vector<1x1x24xf32>
    %38 = vector.broadcast %37 : vector<1x1x24xf32> to vector<16x16x24xf32>
    %39 = arith.mulf %34, %38 : vector<16x16x24xf32>
    %40 = arith.addf %33, %39 : vector<16x16x24xf32>
    %c1_35 = arith.constant 1 : index
    %c0_36 = arith.constant 0 : index
    %c0_37 = arith.constant 0 : index
    %41 = vector.load %arg9[%c1_35, %c0_36, %c0_37] : memref<18x18x24xf32, #tpu.memory_space<vmem>>, vector<16x16x24xf32>
    %42 = vector.extract_strided_slice %20 {offsets = [1, 0, 0], sizes = [1, 1, 24], strides = [1, 1, 1]} : vector<3x3x24xf32> to vector<1x1x24xf32>
    %43 = vector.shape_cast %42 : vector<1x1x24xf32> to vector<24xf32>
    %44 = vector.shape_cast %43 : vector<24xf32> to vector<1x1x24xf32>
    %45 = vector.broadcast %44 : vector<1x1x24xf32> to vector<16x16x24xf32>
    %46 = arith.mulf %41, %45 : vector<16x16x24xf32>
    %47 = arith.addf %40, %46 : vector<16x16x24xf32>
    %c1_38 = arith.constant 1 : index
    %c1_39 = arith.constant 1 : index
    %c0_40 = arith.constant 0 : index
    %48 = vector.load %arg9[%c1_38, %c1_39, %c0_40] : memref<18x18x24xf32, #tpu.memory_space<vmem>>, vector<16x16x24xf32>
    %49 = vector.extract_strided_slice %20 {offsets = [1, 1, 0], sizes = [1, 1, 24], strides = [1, 1, 1]} : vector<3x3x24xf32> to vector<1x1x24xf32>
    %50 = vector.shape_cast %49 : vector<1x1x24xf32> to vector<24xf32>
    %51 = vector.shape_cast %50 : vector<24xf32> to vector<1x1x24xf32>
    %52 = vector.broadcast %51 : vector<1x1x24xf32> to vector<16x16x24xf32>
    %53 = arith.mulf %48, %52 : vector<16x16x24xf32>
    %54 = arith.addf %47, %53 : vector<16x16x24xf32>
    %c1_41 = arith.constant 1 : index
    %c2_42 = arith.constant 2 : index
    %c0_43 = arith.constant 0 : index
    %55 = vector.load %arg9[%c1_41, %c2_42, %c0_43] : memref<18x18x24xf32, #tpu.memory_space<vmem>>, vector<16x16x24xf32>
    %56 = vector.extract_strided_slice %20 {offsets = [1, 2, 0], sizes = [1, 1, 24], strides = [1, 1, 1]} : vector<3x3x24xf32> to vector<1x1x24xf32>
    %57 = vector.shape_cast %56 : vector<1x1x24xf32> to vector<24xf32>
    %58 = vector.shape_cast %57 : vector<24xf32> to vector<1x1x24xf32>
    %59 = vector.broadcast %58 : vector<1x1x24xf32> to vector<16x16x24xf32>
    %60 = arith.mulf %55, %59 : vector<16x16x24xf32>
    %61 = arith.addf %54, %60 : vector<16x16x24xf32>
    %c2_44 = arith.constant 2 : index
    %c0_45 = arith.constant 0 : index
    %c0_46 = arith.constant 0 : index
    %62 = vector.load %arg9[%c2_44, %c0_45, %c0_46] : memref<18x18x24xf32, #tpu.memory_space<vmem>>, vector<16x16x24xf32>
    %63 = vector.extract_strided_slice %20 {offsets = [2, 0, 0], sizes = [1, 1, 24], strides = [1, 1, 1]} : vector<3x3x24xf32> to vector<1x1x24xf32>
    %64 = vector.shape_cast %63 : vector<1x1x24xf32> to vector<24xf32>
    %65 = vector.shape_cast %64 : vector<24xf32> to vector<1x1x24xf32>
    %66 = vector.broadcast %65 : vector<1x1x24xf32> to vector<16x16x24xf32>
    %67 = arith.mulf %62, %66 : vector<16x16x24xf32>
    %68 = arith.addf %61, %67 : vector<16x16x24xf32>
    %c2_47 = arith.constant 2 : index
    %c1_48 = arith.constant 1 : index
    %c0_49 = arith.constant 0 : index
    %69 = vector.load %arg9[%c2_47, %c1_48, %c0_49] : memref<18x18x24xf32, #tpu.memory_space<vmem>>, vector<16x16x24xf32>
    %70 = vector.extract_strided_slice %20 {offsets = [2, 1, 0], sizes = [1, 1, 24], strides = [1, 1, 1]} : vector<3x3x24xf32> to vector<1x1x24xf32>
    %71 = vector.shape_cast %70 : vector<1x1x24xf32> to vector<24xf32>
    %72 = vector.shape_cast %71 : vector<24xf32> to vector<1x1x24xf32>
    %73 = vector.broadcast %72 : vector<1x1x24xf32> to vector<16x16x24xf32>
    %74 = arith.mulf %69, %73 : vector<16x16x24xf32>
    %75 = arith.addf %68, %74 : vector<16x16x24xf32>
    %c2_50 = arith.constant 2 : index
    %c2_51 = arith.constant 2 : index
    %c0_52 = arith.constant 0 : index
    %76 = vector.load %arg9[%c2_50, %c2_51, %c0_52] : memref<18x18x24xf32, #tpu.memory_space<vmem>>, vector<16x16x24xf32>
    %77 = vector.extract_strided_slice %20 {offsets = [2, 2, 0], sizes = [1, 1, 24], strides = [1, 1, 1]} : vector<3x3x24xf32> to vector<1x1x24xf32>
    %78 = vector.shape_cast %77 : vector<1x1x24xf32> to vector<24xf32>
    %79 = vector.shape_cast %78 : vector<24xf32> to vector<1x1x24xf32>
    %80 = vector.broadcast %79 : vector<1x1x24xf32> to vector<16x16x24xf32>
    %81 = arith.mulf %76, %80 : vector<16x16x24xf32>
    %82 = arith.addf %75, %81 : vector<16x16x24xf32>
    %c0_53 = arith.constant 0 : index
    %c0_54 = arith.constant 0 : index
    %c0_55 = arith.constant 0 : index
    %83 = vector.load %arg5[%c0_53, %c0_54, %c0_55] : memref<1x1x24xf32, #tpu.memory_space<vmem>>, vector<1x1x24xf32>
    %84 = vector.broadcast %83 : vector<1x1x24xf32> to vector<16x16x24xf32>
    %85 = arith.addf %82, %84 : vector<16x16x24xf32>
    %cst_56 = arith.constant 0.000000e+00 : f32
    %cst_57 = arith.constant 6.000000e+00 : f32
    %86 = vector.broadcast %cst_56 : f32 to vector<16x16x24xf32>
    %87 = arith.maximumf %86, %85 : vector<16x16x24xf32>
    %88 = vector.broadcast %cst_57 : f32 to vector<16x16x24xf32>
    %89 = arith.minimumf %88, %87 : vector<16x16x24xf32>
    %90 = vector.shape_cast %89 : vector<16x16x24xf32> to vector<256x24xf32>
    %91 = arith.truncf %90 : vector<256x24xf32> to vector<256x24xbf16>
    %c0_58 = arith.constant 0 : index
    %c0_59 = arith.constant 0 : index
    %92 = vector.load %arg6[%c0_58, %c0_59] : memref<24x4xbf16, #tpu.memory_space<vmem>>, vector<24x4xbf16>
    %cst_60 = arith.constant dense<0.000000e+00> : vector<256x4xf32>
    %93 = tpu.matmul %91, %92, %cst_60 {dimension_numbers = #tpu.dot_dimension_numbers<[1], [0], [0], [1], [0, 0, 1, 1], [], []>} : vector<256x24xbf16>, vector<24x4xbf16>, vector<256x4xf32> -> vector<256x4xf32>
    %c0_61 = arith.constant 0 : index
    %c0_62 = arith.constant 0 : index
    %94 = vector.load %arg7[%c0_61, %c0_62] : memref<1x4xf32, #tpu.memory_space<vmem>>, vector<1x4xf32>
    %95 = vector.broadcast %94 : vector<1x4xf32> to vector<256x4xf32>
    %96 = arith.addf %93, %95 : vector<256x4xf32>
    %97 = arith.addf %96, %1 : vector<256x4xf32>
    %98 = vector.shape_cast %97 : vector<256x4xf32> to vector<1x16x16x4xf32>
    %c0_63 = arith.constant 0 : index
    %c0_64 = arith.constant 0 : index
    %c0_65 = arith.constant 0 : index
    %c0_66 = arith.constant 0 : index
    %99 = vector.load %arg8[%c0_63, %c0_64, %c0_65, %c0_66] : memref<1x16x16x4xf32, #tpu.memory_space<vmem>>, vector<1x16x16x4xf32>
    tpu.vector_store %arg8[%c0_63, %c0_64, %c0_65, %c0_66], %98 {strides = array<i32>} : memref<1x16x16x4xf32, #tpu.memory_space<vmem>>, vector<1x16x16x4xf32>,
    return
  }
  func.func @transform_0(%arg0: i32) -> (i32, i32, i32, i32) {
    %c0_i32 = arith.constant 0 : i32
    %c0_i32_0 = arith.constant 0 : i32
    %c0_i32_1 = arith.constant 0 : i32
    %c0_i32_2 = arith.constant 0 : i32
    return %arg0, %c0_i32, %c0_i32_0, %c0_i32_1 : i32, i32, i32, i32
  }
  func.func @transform_1(%arg0: i32) -> (i32, i32) {
    %c0_i32 = arith.constant 0 : i32
    %c0_i32_0 = arith.constant 0 : i32
    %c0_i32_1 = arith.constant 0 : i32
    return %c0_i32, %c0_i32_0 : i32, i32
  }
  func.func @transform_2(%arg0: i32) -> (i32, i32) {
    %c0_i32 = arith.constant 0 : i32
    %c0_i32_0 = arith.constant 0 : i32
    %c0_i32_1 = arith.constant 0 : i32
    return %c0_i32, %c0_i32_0 : i32, i32
  }
  func.func @transform_3(%arg0: i32) -> (i32, i32, i32) {
    %c0_i32 = arith.constant 0 : i32
    %c0_i32_0 = arith.constant 0 : i32
    %c0_i32_1 = arith.constant 0 : i32
    %c0_i32_2 = arith.constant 0 : i32
    return %c0_i32, %c0_i32_0, %c0_i32_1 : i32, i32, i32
  }
  func.func @transform_4(%arg0: i32) -> (i32, i32, i32) {
    %c0_i32 = arith.constant 0 : i32
    %c0_i32_0 = arith.constant 0 : i32
    %c0_i32_1 = arith.constant 0 : i32
    %c0_i32_2 = arith.constant 0 : i32
    return %c0_i32, %c0_i32_0, %c0_i32_1 : i32, i32, i32
  }
  func.func @transform_5(%arg0: i32) -> (i32, i32) {
    %c0_i32 = arith.constant 0 : i32
    %c0_i32_0 = arith.constant 0 : i32
    %c0_i32_1 = arith.constant 0 : i32
    return %c0_i32, %c0_i32_0 : i32, i32
  }
  func.func @transform_6(%arg0: i32) -> (i32, i32) {
    %c0_i32 = arith.constant 0 : i32
    %c0_i32_0 = arith.constant 0 : i32
    %c0_i32_1 = arith.constant 0 : i32
    return %c0_i32, %c0_i32_0 : i32, i32
  }
  func.func @transform_7(%arg0: i32) -> (i32, i32, i32, i32) {
    %c0_i32 = arith.constant 0 : i32
    %c0_i32_0 = arith.constant 0 : i32
    %c0_i32_1 = arith.constant 0 : i32
    %c0_i32_2 = arith.constant 0 : i32
    return %arg0, %c0_i32, %c0_i32_0, %c0_i32_1 : i32, i32, i32, i32
  }
}

</mosaic_0001>

<llo_original>
// kernel: tpu_custom_call.1
$region0: #{tpu_custom_call.1}
  #allocation0 [shape = 'u32[]', space=smem, size = 0x4, offset = 0x4, fixed_abs, tag = 'smem constant byte address 0x4 - core index']
  #allocation1 [shape = 'u32[144,128]{1,0:T(1,128)}', space=vmem, size = 0x12000, scoped, tag = 'internal scratch']
  #allocation2 [shape = 'f32[18,18,24]{2,1,0:T(8,128)}', space=vmem, size = 0x36000, scoped, tag = 'scratch operand']
  %s0 = inlined_call_operand.vmem [shape: f32[2,16,16,4], index: 0, kind: input, shape index: {}]
  %s1 = inlined_call_operand.vmem [shape: bf16[4,24], index: 1, kind: input, shape index: {}]
  %s2 = inlined_call_operand.vmem [shape: f32[1,24], index: 2, kind: input, shape index: {}]
  %s3 = inlined_call_operand.vmem [shape: f32[3,3,24], index: 3, kind: input, shape index: {}]
  %s4 = inlined_call_operand.vmem [shape: f32[1,1,24], index: 4, kind: input, shape index: {}]
  %s5 = inlined_call_operand.vmem [shape: bf16[24,4], index: 5, kind: input, shape index: {}]
  %s6 = inlined_call_operand.vmem [shape: f32[1,4], index: 6, kind: input, shape index: {}]
  %s7 = inlined_call_operand.vmem [shape: f32[2,16,16,4], index: 7, kind: output, shape index: {}]
  %s8 = sld [smem:[#allocation0]]
  $region61: #{tpu_custom_call.1} parent=0
    _
  %s10 = ssub.s32 1, %s8
  %s11 = scalar_select 0, %s10, %s8
  loop: start=0, step=1, limit=4
  $region2: #{tpu_custom_call.1} parent=0 // loop_pre_header
    _
  $region3: #{tpu_custom_call.1} parent=0 // loop_header
    %s13 = sphi 0, %s17
    %p14 = scmp.ge.s32.totalorder %s13, 4
    %s23 = sphi 0, %s25
    %s26 = sphi 0, %s23
    %s27 = sphi 0, %s26
    %s43 = sphi 0, %s27
    %s47 = sphi 0, %s47
    %s49 = sphi 0, %s47
    %s50 = sphi 0, %s49
    %s64 = sphi 0, %s50
    %s68 = sphi 0, %s68
    %s70 = sphi 0, %s68
    %s71 = sphi 0, %s70
    %s85 = sphi 0, %s71
    %s89 = sphi 0, %s89
    %s91 = sphi 0, %s89
    %s92 = sphi 0, %s91
    %s106 = sphi 0, %s92
    %s110 = sphi 0, %s110
    %s112 = sphi 0, %s110
    %s113 = sphi 0, %s112
    %s127 = sphi 0, %s113
    %s131 = sphi 0, %s131
    %s133 = sphi 0, %s131
    %s134 = sphi 0, %s133
    %s148 = sphi 0, %s134
    %s152 = sphi 0, %s152
    %s154 = sphi 0, %s152
    %s155 = sphi 0, %s154
    %s169 = sphi 0, %s155
    %s175 = sphi 0, %s177
    %s178 = sphi 0, %s175
    %s179 = sphi 0, %s178
    %s195 = sphi 0, %s179
  $region4: #{tpu_custom_call.1} parent=0 // loop_header_branch
    %16 = sbr.rel (%p14) target = $region8
  $region5: #{tpu_custom_call.1} parent=0 // loop_body
    %s18 = ssub.s32 %s13, 1
    %s19 = ssub.s32 %s13, 2
    %s20 = sadd.s32 %s13, 1
    %s21 = ssub.s32 %s13, %s20
    %p22 = scmp.eq.s32.totalorder %s21, 0
    %s24 = sadd.s32 %s23, 1
    %s25 = scalar_select %p22, %s23, %s24
    %p28 = pneg %p22
    %p29 = scmp.eq.s32.totalorder %s13, 1
    %p30 = por %p28, %p29
    %p31 = scmp.ne.s32.totalorder %s23, %s26
    %p32 = scmp.eq.s32.totalorder %s13, 0
    %p33 = por %p31, %p32
    %p34 = scmp.ne.s32.totalorder %s23, %s26
    %p35 = scmp.eq.s32.totalorder %s18, 1
    %p36 = por %p34, %p35
    %p37 = scmp.ne.s32.totalorder %s26, %s27
    %p38 = scmp.eq.s32.totalorder %s18, 0
    %p39 = por %p37, %p38
    %p40 = scmp.ne.s32.totalorder %s26, %s27
    %p41 = scmp.eq.s32.totalorder %s19, 1
    %p42 = por %p40, %p41
    %p44 = scmp.ne.s32.totalorder %s27, %s43
    %p45 = scmp.eq.s32.totalorder %s19, 0
    %p46 = por %p44, %p45
    %s48 = sadd.s32 %s47, 1
    %p51 = scmp.eq.s32.totalorder %s13, 1
    %p52 = scmp.ne.s32.totalorder %s47, %s49
    %p53 = scmp.eq.s32.totalorder %s13, 0
    %p54 = por %p52, %p53
    %p55 = scmp.ne.s32.totalorder %s47, %s49
    %p56 = scmp.eq.s32.totalorder %s18, 1
    %p57 = por %p55, %p56
    %p58 = scmp.ne.s32.totalorder %s49, %s50
    %p59 = scmp.eq.s32.totalorder %s18, 0
    %p60 = por %p58, %p59
    %p61 = scmp.ne.s32.totalorder %s49, %s50
    %p62 = scmp.eq.s32.totalorder %s19, 1
    %p63 = por %p61, %p62
    %p65 = scmp.ne.s32.totalorder %s50, %s64
    %p66 = scmp.eq.s32.totalorder %s19, 0
    %p67 = por %p65, %p66
    %s69 = sadd.s32 %s68, 1
    %p72 = scmp.eq.s32.totalorder %s13, 1
    %p73 = scmp.ne.s32.totalorder %s68, %s70
    %p74 = scmp.eq.s32.totalorder %s13, 0
    %p75 = por %p73, %p74
    %p76 = scmp.ne.s32.totalorder %s68, %s70
    %p77 = scmp.eq.s32.totalorder %s18, 1
    %p78 = por %p76, %p77
    %p79 = scmp.ne.s32.totalorder %s70, %s71
    %p80 = scmp.eq.s32.totalorder %s18, 0
    %p81 = por %p79, %p80
    %p82 = scmp.ne.s32.totalorder %s70, %s71
    %p83 = scmp.eq.s32.totalorder %s19, 1
    %p84 = por %p82, %p83
    %p86 = scmp.ne.s32.totalorder %s71, %s85
    %p87 = scmp.eq.s32.totalorder %s19, 0
    %p88 = por %p86, %p87
    %s90 = sadd.s32 %s89, 1
    %p93 = scmp.eq.s32.totalorder %s13, 1
    %p94 = scmp.ne.s32.totalorder %s89, %s91
    %p95 = scmp.eq.s32.totalorder %s13, 0
    %p96 = por %p94, %p95
    %p97 = scmp.ne.s32.totalorder %s89, %s91
    %p98 = scmp.eq.s32.totalorder %s18, 1
    %p99 = por %p97, %p98
    %p100 = scmp.ne.s32.totalorder %s91, %s92
    %p101 = scmp.eq.s32.totalorder %s18, 0
    %p102 = por %p100, %p101
    %p103 = scmp.ne.s32.totalorder %s91, %s92
    %p104 = scmp.eq.s32.totalorder %s19, 1
    %p105 = por %p103, %p104
    %p107 = scmp.ne.s32.totalorder %s92, %s106
    %p108 = scmp.eq.s32.totalorder %s19, 0
    %p109 = por %p107, %p108
    %s111 = sadd.s32 %s110, 1
    %p114 = scmp.eq.s32.totalorder %s13, 1
    %p115 = scmp.ne.s32.totalorder %s110, %s112
    %p116 = scmp.eq.s32.totalorder %s13, 0
    %p117 = por %p115, %p116
    %p118 = scmp.ne.s32.totalorder %s110, %s112
    %p119 = scmp.eq.s32.totalorder %s18, 1
    %p120 = por %p118, %p119
    %p121 = scmp.ne.s32.totalorder %s112, %s113
    %p122 = scmp.eq.s32.totalorder %s18, 0
    %p123 = por %p121, %p122
    %p124 = scmp.ne.s32.totalorder %s112, %s113
    %p125 = scmp.eq.s32.totalorder %s19, 1
    %p126 = por %p124, %p125
    %p128 = scmp.ne.s32.totalorder %s113, %s127
    %p129 = scmp.eq.s32.totalorder %s19, 0
    %p130 = por %p128, %p129
    %s132 = sadd.s32 %s131, 1
    %p135 = scmp.eq.s32.totalorder %s13, 1
    %p136 = scmp.ne.s32.totalorder %s131, %s133
    %p137 = scmp.eq.s32.totalorder %s13, 0
    %p138 = por %p136, %p137
    %p139 = scmp.ne.s32.totalorder %s131, %s133
    %p140 = scmp.eq.s32.totalorder %s18, 1
    %p141 = por %p139, %p140
    %p142 = scmp.ne.s32.totalorder %s133, %s134
    %p143 = scmp.eq.s32.totalorder %s18, 0
    %p144 = por %p142, %p143
    %p145 = scmp.ne.s32.totalorder %s133, %s134
    %p146 = scmp.eq.s32.totalorder %s19, 1
    %p147 = por %p145, %p146
    %p149 = scmp.ne.s32.totalorder %s134, %s148
    %p150 = scmp.eq.s32.totalorder %s19, 0
    %p151 = por %p149, %p150
    %s153 = sadd.s32 %s152, 1
    %p156 = scmp.eq.s32.totalorder %s13, 1
    %p157 = scmp.ne.s32.totalorder %s152, %s154
    %p158 = scmp.eq.s32.totalorder %s13, 0
    %p159 = por %p157, %p158
    %p160 = scmp.ne.s32.totalorder %s152, %s154
    %p161 = scmp.eq.s32.totalorder %s18, 1
    %p162 = por %p160, %p161
    %p163 = scmp.ne.s32.totalorder %s154, %s155
    %p164 = scmp.eq.s32.totalorder %s18, 0
    %p165 = por %p163, %p164
    %p166 = scmp.ne.s32.totalorder %s154, %s155
    %p167 = scmp.eq.s32.totalorder %s19, 1
    %p168 = por %p166, %p167
    %p170 = scmp.ne.s32.totalorder %s155, %s169
    %p171 = scmp.eq.s32.totalorder %s19, 0
    %p172 = por %p170, %p171
    %s173 = ssub.s32 %s13, %s20
    %p174 = scmp.eq.s32.totalorder %s173, 0
    %s176 = sadd.s32 %s175, 1
    %s177 = scalar_select %p174, %s175, %s176
    %p180 = pneg %p174
    %p181 = scmp.eq.s32.totalorder %s13, 1
    %p182 = por %p180, %p181
    %p183 = scmp.ne.s32.totalorder %s175, %s178
    %p184 = scmp.eq.s32.totalorder %s13, 0
    %p185 = por %p183, %p184
    %p186 = scmp.ne.s32.totalorder %s175, %s178
    %p187 = scmp.eq.s32.totalorder %s18, 1
    %p188 = por %p186, %p187
    %p189 = scmp.ne.s32.totalorder %s178, %s179
    %p190 = scmp.eq.s32.totalorder %s18, 0
    %p191 = por %p189, %p190
    %p192 = scmp.ne.s32.totalorder %s178, %s179
    %p193 = scmp.eq.s32.totalorder %s19, 1
    %p194 = por %p192, %p193
    %p196 = scmp.ne.s32.totalorder %s179, %s195
    %p197 = scmp.eq.s32.totalorder %s19, 0
    %p198 = por %p196, %p197
    %p199 = scmp.le.s32.totalorder 1, %s13
    %p200 = scmp.lt.s32.totalorder %s13, 3
    %p201 = pnand %p199, %p200
    %p202 = pneg %p201
    // Predicated region
    $region9: #{tpu_custom_call.1} parent=5 // pred_check
      _
    $region10: #{tpu_custom_call.1} parent=5 // pred_check_branch
      %204 = sbr.rel (%p201) target = $region12
    $region11: #{tpu_custom_call.1} parent=5 // pred_region
      %s205 = ssub.s32 %s13, 1
      // Predicated region
      $region13: #{tpu_custom_call.1} parent=11 // pred_check
        %p206 = pneg %p60
      $region14: #{tpu_custom_call.1} parent=11 // pred_check_branch
        %208 = sbr.rel (%p206) target = $region16
      $region15: #{tpu_custom_call.1} parent=11 // pred_region
        _
      $region16: #{tpu_custom_call.1} parent=11 // pred_fallthru
        _
      // Predicated region
      $region17: #{tpu_custom_call.1} parent=11 // pred_check
        %p209 = pneg %p81
      $region18: #{tpu_custom_call.1} parent=11 // pred_check_branch
        %211 = sbr.rel (%p209) target = $region20
      $region19: #{tpu_custom_call.1} parent=11 // pred_region
        _
      $region20: #{tpu_custom_call.1} parent=11 // pred_fallthru
        _
      // Predicated region
      $region21: #{tpu_custom_call.1} parent=11 // pred_check
        %p212 = pneg %p102
      $region22: #{tpu_custom_call.1} parent=11 // pred_check_branch
        %214 = sbr.rel (%p212) target = $region24
      $region23: #{tpu_custom_call.1} parent=11 // pred_region
        _
      $region24: #{tpu_custom_call.1} parent=11 // pred_fallthru
        _
      // Predicated region
      $region25: #{tpu_custom_call.1} parent=11 // pred_check
        %p215 = pneg %p123
      $region26: #{tpu_custom_call.1} parent=11 // pred_check_branch
        %217 = sbr.rel (%p215) target = $region28
      $region27: #{tpu_custom_call.1} parent=11 // pred_region
        _
      $region28: #{tpu_custom_call.1} parent=11 // pred_fallthru
        _
      // Predicated region
      $region29: #{tpu_custom_call.1} parent=11 // pred_check
        %p218 = pneg %p144
      $region30: #{tpu_custom_call.1} parent=11 // pred_check_branch
        %220 = sbr.rel (%p218) target = $region32
      $region31: #{tpu_custom_call.1} parent=11 // pred_region
        _
      $region32: #{tpu_custom_call.1} parent=11 // pred_fallthru
        _
      // Predicated region
      $region33: #{tpu_custom_call.1} parent=11 // pred_check
        %p221 = pneg %p165
      $region34: #{tpu_custom_call.1} parent=11 // pred_check_branch
        %223 = sbr.rel (%p221) target = $region36
      $region35: #{tpu_custom_call.1} parent=11 // pred_region
        _
      $region36: #{tpu_custom_call.1} parent=11 // pred_fallthru
        _
    $region12: #{tpu_custom_call.1} parent=5 // pred_fallthru
      _
    %p224 = scmp.lt.s32.totalorder %s13, 2
    // Predicated region
    $region37: #{tpu_custom_call.1} parent=5 // pred_check
      %p225 = pneg %p224
    $region38: #{tpu_custom_call.1} parent=5 // pred_check_branch
      %227 = sbr.rel (%p225) target = $region40
    $region39: #{tpu_custom_call.1} parent=5 // pred_region
      // Predicated region
      $region41: #{tpu_custom_call.1} parent=39 // pred_check
        %p228 = pneg %p33
      $region42: #{tpu_custom_call.1} parent=39 // pred_check_branch
        %230 = sbr.rel (%p228) target = $region44
      $region43: #{tpu_custom_call.1} parent=39 // pred_region
        %p231 = scmp.lt.s32.totalorder %s13, 1
        %s232 = scalar_select %p231, %s13, 1
        %s233 = smul.addr %s232, 32
        %s234 = smul.addr %s233, 8
        %s235 = scalar_lea.vmem %s0, %s234
      $region44: #{tpu_custom_call.1} parent=39 // pred_fallthru
        _
    $region40: #{tpu_custom_call.1} parent=5 // pred_fallthru
      _
    %p236 = scmp.le.s32.totalorder 1, %s13
    %p237 = scmp.lt.s32.totalorder %s13, 3
    %p238 = pnand %p236, %p237
    %p239 = pneg %p238
    // Predicated region
    $region45: #{tpu_custom_call.1} parent=5 // pred_check
      _
    $region46: #{tpu_custom_call.1} parent=5 // pred_check_branch
      %241 = sbr.rel (%p238) target = $region48
    $region47: #{tpu_custom_call.1} parent=5 // pred_region
      %s242 = ssub.s32 %s13, 1
      %p243 = scmp.lt.s32.totalorder %s18, 1
      %s244 = scalar_select %p243, %s18, 1
      %s245 = smul.addr %s244, 32
      %s246 = smul.addr %s245, 8
      %s247 = scalar_lea.vmem %s0, %s246
      %p248 = pneg %p39
      %p249 = pneg %p36
      %p250 = pneg %p60
      %p251 = pneg %p57
      %p252 = pneg %p81
      %p253 = pneg %p78
      %p254 = pneg %p102
      %p255 = pneg %p99
      %p256 = pneg %p123
      %p257 = pneg %p120
      %p258 = pneg %p144
      %p259 = pneg %p141
      %p260 = pneg %p165
      %p261 = pneg %p162
      %p262 = pneg %p191
      %p263 = pneg %p188
      %p264 = scmp.lt.s32.totalorder %s18, 1
      %s265 = scalar_select %p264, %s18, 1
      %s266 = smul.addr %s265, 32
      %s267 = smul.addr %s266, 8
      %s268 = scalar_lea.vmem %s7, %s267
      %p269 = scmp.lt.s32.totalorder %s18, 1
      %s270 = scalar_select %p269, %s18, 1
      %s271 = smul.addr %s270, 32
      %s272 = smul.addr %s271, 8
      %s273 = scalar_lea.vmem %s0, %s272
      %p274 = scmp.lt.s32.totalorder %s18, 1
      %s275 = scalar_select %p274, %s18, 1
      %s276 = smul.addr %s275, 32
      %s277 = smul.addr %s276, 8
      %s278 = scalar_lea.vmem %s7, %s277
      %v280 = vld [vmem:[%s273] sm:$0xff]
      %v281 = vld [vmem:[%s273 + $0x8] sm:$0xff]
      %v282 = vld [vmem:[%s273 + $0x10] sm:$0xff]
      %v283 = vld [vmem:[%s273 + $0x18] sm:$0xff]
      %v284 = vld [vmem:[%s273 + $0x20] sm:$0xff]
      %v285 = vld [vmem:[%s273 + $0x28] sm:$0xff]
      %v286 = vld [vmem:[%s273 + $0x30] sm:$0xff]
      %v287 = vld [vmem:[%s273 + $0x38] sm:$0xff]
      %v288 = vld [vmem:[%s273 + $0x40] sm:$0xff]
      %v289 = vld [vmem:[%s273 + $0x48] sm:$0xff]
      %v290 = vld [vmem:[%s273 + $0x50] sm:$0xff]
      %v291 = vld [vmem:[%s273 + $0x58] sm:$0xff]
      %v292 = vld [vmem:[%s273 + $0x60] sm:$0xff]
      %v293 = vld [vmem:[%s273 + $0x68] sm:$0xff]
      %v294 = vld [vmem:[%s273 + $0x70] sm:$0xff]
      %v295 = vld [vmem:[%s273 + $0x78] sm:$0xff]
      %v296 = vld [vmem:[%s273 + $0x80] sm:$0xff]
      %v297 = vld [vmem:[%s273 + $0x88] sm:$0xff]
      %v298 = vld [vmem:[%s273 + $0x90] sm:$0xff]
      %v299 = vld [vmem:[%s273 + $0x98] sm:$0xff]
      %v300 = vld [vmem:[%s273 + $0xa0] sm:$0xff]
      %v301 = vld [vmem:[%s273 + $0xa8] sm:$0xff]
      %v302 = vld [vmem:[%s273 + $0xb0] sm:$0xff]
      %v303 = vld [vmem:[%s273 + $0xb8] sm:$0xff]
      %v304 = vld [vmem:[%s273 + $0xc0] sm:$0xff]
      %v305 = vld [vmem:[%s273 + $0xc8] sm:$0xff]
      %v306 = vld [vmem:[%s273 + $0xd0] sm:$0xff]
      %v307 = vld [vmem:[%s273 + $0xd8] sm:$0xff]
      %v308 = vld [vmem:[%s273 + $0xe0] sm:$0xff]
      %v309 = vld [vmem:[%s273 + $0xe8] sm:$0xff]
      %v310 = vld [vmem:[%s273 + $0xf0] sm:$0xff]
      %v311 = vld [vmem:[%s273 + $0xf8] sm:$0xff]
      %v312 = vpack.c.bf16 %v281, %v280
      %v313 = vpack.c.bf16 %v283, %v282
      %v314 = vpack.c.bf16 %v285, %v284
      %v315 = vpack.c.bf16 %v287, %v286
      %v316 = vpack.c.bf16 %v289, %v288
      %v317 = vpack.c.bf16 %v291, %v290
      %v318 = vpack.c.bf16 %v293, %v292
      %v319 = vpack.c.bf16 %v295, %v294
      %v320 = vpack.c.bf16 %v297, %v296
      %v321 = vpack.c.bf16 %v299, %v298
      %v322 = vpack.c.bf16 %v301, %v300
      %v323 = vpack.c.bf16 %v303, %v302
      %v324 = vpack.c.bf16 %v305, %v304
      %v325 = vpack.c.bf16 %v307, %v306
      %v326 = vpack.c.bf16 %v309, %v308
      %v327 = vpack.c.bf16 %v311, %v310
      %v328 = vld [vmem:[%s1] sm:$0x3]
      %v329 = vld [vmem:[%s2] sm:$0x1]
      %v331 = vlaneseq
      %v332 = vshrl.u32 %v331, 7
      %v333 = vsub.s32 0, %v332
      %v334 = vrot.slane %v329, %v333
      %vm336 = vcmask 31744
      %v338 = vsel %vm336, %v312, 0
      %v341 = vsel %vm336, %v313, 0
      %v344 = vsel %vm336, %v314, 0
      %v347 = vsel %vm336, %v315, 0
      %v350 = vsel %vm336, %v316, 0
      %v353 = vsel %vm336, %v317, 0
      %v356 = vsel %vm336, %v318, 0
      %v359 = vsel %vm336, %v319, 0
      %v362 = vsel %vm336, %v320, 0
      %v365 = vsel %vm336, %v321, 0
      %v368 = vsel %vm336, %v322, 0
      %v371 = vsel %vm336, %v323, 0
      %v374 = vsel %vm336, %v324, 0
      %v377 = vsel %vm336, %v325, 0
      %v380 = vsel %vm336, %v326, 0
      %v383 = vsel %vm336, %v327, 0
      %vm385 = vcmask 1041408
      %v387 = vsel %vm385, %v328, 0
      %389 = vmatprep.subr.bf16.mxu0 0
      %390 = vmatpush1.bf16.msra.mxu0 %v387
      %391 = vmatprep.subr.bf16.mxu0 0
      %392 = vmatpush1.bf16.msra.mxu0 0
      %393 = vmatprep.subr.bf16.mxu0 0
      %394 = vmatpush1.bf16.msra.mxu0 0
      %395 = vmatprep.subr.bf16.mxu0 0
      %396 = vmatpush1.bf16.msra.mxu0 0
      %397 = vmatprep.subr.bf16.mxu0 0
      %398 = vmatpush1.bf16.msra.mxu0 0
      %399 = vmatprep.subr.bf16.mxu0 0
      %400 = vmatpush1.bf16.msra.mxu0 0
      %401 = vmatprep.subr.bf16.mxu0 0
      %402 = vmatpush1.bf16.msra.mxu0 0
      %403 = vmatprep.subr.bf16.mxu0 0
      %404 = vmatpush1.bf16.msra.mxu0 0
      %405 = vmatprep.subr.bf16.mxu0 0
      %406 = vmatpush1.bf16.msra.mxu0 0
      %407 = vmatprep.subr.bf16.mxu0 0
      %408 = vmatpush1.bf16.msra.mxu0 0
      %409 = vmatprep.subr.bf16.mxu0 0
      %410 = vmatpush1.bf16.msra.mxu0 0
      %411 = vmatprep.subr.bf16.mxu0 0
      %412 = vmatpush1.bf16.msra.mxu0 0
      %413 = vmatprep.subr.bf16.mxu0 0
      %414 = vmatpush1.bf16.msra.mxu0 0
      %415 = vmatprep.subr.bf16.mxu0 0
      %416 = vmatpush1.bf16.msra.mxu0 0
      %417 = vmatprep.subr.bf16.mxu0 0
      %418 = vmatpush1.bf16.msra.mxu0 0
      %419 = vmatprep.subr.bf16.mxu0 0
      %420 = vmatpush1.bf16.msra.mxu0 0
      %421 = vmatprep.mubr.bf16.mxu0 0
      %422 = vmatmul.mubr.bf16.gmra.mrb[0].mxu0 %v338
      %v423 = vpop.f32.mrb[0].mxu0
      %v424 = vadd.f32 %v334, %v423
      %v425 = vpop.f32.mrb[0].mxu0
      %v426 = vpop.f32.mrb[0].mxu0
      %v427 = vadd.f32 %v334, %v426
      %v428 = vpop.f32.mrb[0].mxu0
      %429 = vmatprep.mubr.bf16.mxu0 0
      %430 = vmatmul.mubr.bf16.gmra.mrb[0].mxu0 %v341
      %v431 = vpop.f32.mrb[0].mxu0
      %v432 = vadd.f32 %v334, %v431
      %v433 = vpop.f32.mrb[0].mxu0
      %v434 = vpop.f32.mrb[0].mxu0
      %v435 = vadd.f32 %v334, %v434
      %v436 = vpop.f32.mrb[0].mxu0
      %437 = vmatprep.mubr.bf16.mxu0 0
      %438 = vmatmul.mubr.bf16.gmra.mrb[0].mxu0 %v344
      %v439 = vpop.f32.mrb[0].mxu0
      %v440 = vadd.f32 %v334, %v439
      %v441 = vpop.f32.mrb[0].mxu0
      %v442 = vpop.f32.mrb[0].mxu0
      %v443 = vadd.f32 %v334, %v442
      %v444 = vpop.f32.mrb[0].mxu0
      %445 = vmatprep.mubr.bf16.mxu0 0
      %446 = vmatmul.mubr.bf16.gmra.mrb[0].mxu0 %v347
      %v447 = vpop.f32.mrb[0].mxu0
      %v448 = vadd.f32 %v334, %v447
      %v449 = vpop.f32.mrb[0].mxu0
      %v450 = vpop.f32.mrb[0].mxu0
      %v451 = vadd.f32 %v334, %v450
      %v452 = vpop.f32.mrb[0].mxu0
      %453 = vmatprep.mubr.bf16.mxu0 0
      %454 = vmatmul.mubr.bf16.gmra.mrb[0].mxu0 %v350
      %v455 = vpop.f32.mrb[0].mxu0
      %v456 = vadd.f32 %v334, %v455
      %v457 = vpop.f32.mrb[0].mxu0
      %v458 = vpop.f32.mrb[0].mxu0
      %v459 = vadd.f32 %v334, %v458
      %v460 = vpop.f32.mrb[0].mxu0
      %461 = vmatprep.mubr.bf16.mxu0 0
      %462 = vmatmul.mubr.bf16.gmra.mrb[0].mxu0 %v353
      %v463 = vpop.f32.mrb[0].mxu0
      %v464 = vadd.f32 %v334, %v463
      %v465 = vpop.f32.mrb[0].mxu0
      %v466 = vpop.f32.mrb[0].mxu0
      %v467 = vadd.f32 %v334, %v466
      %v468 = vpop.f32.mrb[0].mxu0
      %469 = vmatprep.mubr.bf16.mxu0 0
      %470 = vmatmul.mubr.bf16.gmra.mrb[0].mxu0 %v356
      %v471 = vpop.f32.mrb[0].mxu0
      %v472 = vadd.f32 %v334, %v471
      %v473 = vpop.f32.mrb[0].mxu0
      %v474 = vpop.f32.mrb[0].mxu0
      %v475 = vadd.f32 %v334, %v474
      %v476 = vpop.f32.mrb[0].mxu0
      %477 = vmatprep.mubr.bf16.mxu0 0
      %478 = vmatmul.mubr.bf16.gmra.mrb[0].mxu0 %v359
      %v479 = vpop.f32.mrb[0].mxu0
      %v480 = vadd.f32 %v334, %v479
      %v481 = vpop.f32.mrb[0].mxu0
      %v482 = vpop.f32.mrb[0].mxu0
      %v483 = vadd.f32 %v334, %v482
      %v484 = vpop.f32.mrb[0].mxu0
      %485 = vmatprep.mubr.bf16.mxu0 0
      %486 = vmatmul.mubr.bf16.gmra.mrb[0].mxu0 %v362
      %v487 = vpop.f32.mrb[0].mxu0
      %v488 = vadd.f32 %v334, %v487
      %v489 = vpop.f32.mrb[0].mxu0
      %v490 = vpop.f32.mrb[0].mxu0
      %v491 = vadd.f32 %v334, %v490
      %v492 = vpop.f32.mrb[0].mxu0
      %493 = vmatprep.mubr.bf16.mxu0 0
      %494 = vmatmul.mubr.bf16.gmra.mrb[0].mxu0 %v365
      %v495 = vpop.f32.mrb[0].mxu0
      %v496 = vadd.f32 %v334, %v495
      %v497 = vpop.f32.mrb[0].mxu0
      %v498 = vpop.f32.mrb[0].mxu0
      %v499 = vadd.f32 %v334, %v498
      %v500 = vpop.f32.mrb[0].mxu0
      %501 = vmatprep.mubr.bf16.mxu0 0
      %502 = vmatmul.mubr.bf16.gmra.mrb[0].mxu0 %v368
      %v503 = vpop.f32.mrb[0].mxu0
      %v504 = vadd.f32 %v334, %v503
      %v505 = vpop.f32.mrb[0].mxu0
      %v506 = vpop.f32.mrb[0].mxu0
      %v507 = vadd.f32 %v334, %v506
      %v508 = vpop.f32.mrb[0].mxu0
      %509 = vmatprep.mubr.bf16.mxu0 0
      %510 = vmatmul.mubr.bf16.gmra.mrb[0].mxu0 %v371
      %v511 = vpop.f32.mrb[0].mxu0
      %v512 = vadd.f32 %v334, %v511
      %v513 = vpop.f32.mrb[0].mxu0
      %v514 = vpop.f32.mrb[0].mxu0
      %v515 = vadd.f32 %v334, %v514
      %v516 = vpop.f32.mrb[0].mxu0
      %517 = vmatprep.mubr.bf16.mxu0 0
      %518 = vmatmul.mubr.bf16.gmra.mrb[0].mxu0 %v374
      %v519 = vpop.f32.mrb[0].mxu0
      %v520 = vadd.f32 %v334, %v519
      %v521 = vpop.f32.mrb[0].mxu0
      %v522 = vpop.f32.mrb[0].mxu0
      %v523 = vadd.f32 %v334, %v522
      %v524 = vpop.f32.mrb[0].mxu0
      %525 = vmatprep.mubr.bf16.mxu0 0
      %526 = vmatmul.mubr.bf16.gmra.mrb[0].mxu0 %v377
      %v527 = vpop.f32.mrb[0].mxu0
      %v528 = vadd.f32 %v334, %v527
      %v529 = vpop.f32.mrb[0].mxu0
      %v530 = vpop.f32.mrb[0].mxu0
      %v531 = vadd.f32 %v334, %v530
      %v532 = vpop.f32.mrb[0].mxu0
      %533 = vmatprep.mubr.bf16.mxu0 0
      %534 = vmatmul.mubr.bf16.gmra.mrb[0].mxu0 %v380
      %v535 = vpop.f32.mrb[0].mxu0
      %v536 = vadd.f32 %v334, %v535
      %v537 = vpop.f32.mrb[0].mxu0
      %v538 = vpop.f32.mrb[0].mxu0
      %v539 = vadd.f32 %v334, %v538
      %v540 = vpop.f32.mrb[0].mxu0
      %541 = vmatprep.mubr.bf16.mxu0 0
      %542 = vmatmul.mubr.bf16.gmra.mrb[0].mxu0 %v383
      %v543 = vpop.f32.mrb[0].mxu0
      %v544 = vadd.f32 %v334, %v543
      %v545 = vpop.f32.mrb[0].mxu0
      %v546 = vpop.f32.mrb[0].mxu0
      %v547 = vadd.f32 %v334, %v546
      %v548 = vpop.f32.mrb[0].mxu0
      %549 = vdwg.mxu0
      %v550 = vmax.f32 %v424, 0.0
      %v551 = vmax.f32 %v427, 0.0
      %v552 = vmax.f32 %v432, 0.0
      %v553 = vmax.f32 %v435, 0.0
      %v554 = vmax.f32 %v440, 0.0
      %v555 = vmax.f32 %v443, 0.0
      %v556 = vmax.f32 %v448, 0.0
      %v557 = vmax.f32 %v451, 0.0
      %v558 = vmax.f32 %v456, 0.0
      %v559 = vmax.f32 %v459, 0.0
      %v560 = vmax.f32 %v464, 0.0
      %v561 = vmax.f32 %v467, 0.0
      %v562 = vmax.f32 %v472, 0.0
      %v563 = vmax.f32 %v475, 0.0
      %v564 = vmax.f32 %v480, 0.0
      %v565 = vmax.f32 %v483, 0.0
      %v566 = vmax.f32 %v488, 0.0
      %v567 = vmax.f32 %v491, 0.0
      %v568 = vmax.f32 %v496, 0.0
      %v569 = vmax.f32 %v499, 0.0
      %v570 = vmax.f32 %v504, 0.0
      %v571 = vmax.f32 %v507, 0.0
      %v572 = vmax.f32 %v512, 0.0
      %v573 = vmax.f32 %v515, 0.0
      %v574 = vmax.f32 %v520, 0.0
      %v575 = vmax.f32 %v523, 0.0
      %v576 = vmax.f32 %v528, 0.0
      %v577 = vmax.f32 %v531, 0.0
      %v578 = vmax.f32 %v536, 0.0
      %v579 = vmax.f32 %v539, 0.0
      %v580 = vmax.f32 %v544, 0.0
      %v581 = vmax.f32 %v547, 0.0
      %v582 = vmin.f32 %v550, 6.0
      %v583 = vmin.f32 %v551, 6.0
      %v584 = vmin.f32 %v552, 6.0
      %v585 = vmin.f32 %v553, 6.0
      %v586 = vmin.f32 %v554, 6.0
      %v587 = vmin.f32 %v555, 6.0
      %v588 = vmin.f32 %v556, 6.0
      %v589 = vmin.f32 %v557, 6.0
      %v590 = vmin.f32 %v558, 6.0
      %v591 = vmin.f32 %v559, 6.0
      %v592 = vmin.f32 %v560, 6.0
      %v593 = vmin.f32 %v561, 6.0
      %v594 = vmin.f32 %v562, 6.0
      %v595 = vmin.f32 %v563, 6.0
      %v596 = vmin.f32 %v564, 6.0
      %v597 = vmin.f32 %v565, 6.0
      %v598 = vmin.f32 %v566, 6.0
      %v599 = vmin.f32 %v567, 6.0
      %v600 = vmin.f32 %v568, 6.0
      %v601 = vmin.f32 %v569, 6.0
      %v602 = vmin.f32 %v570, 6.0
      %v603 = vmin.f32 %v571, 6.0
      %v604 = vmin.f32 %v572, 6.0
      %v605 = vmin.f32 %v573, 6.0
      %v606 = vmin.f32 %v574, 6.0
      %v607 = vmin.f32 %v575, 6.0
      %v608 = vmin.f32 %v576, 6.0
      %v609 = vmin.f32 %v577, 6.0
      %v610 = vmin.f32 %v578, 6.0
      %v611 = vmin.f32 %v579, 6.0
      %v612 = vmin.f32 %v580, 6.0
      %v613 = vmin.f32 %v581, 6.0
      %vm614 = vcmask 195584
      %615 = vst.msk [vmem:[#allocation2] sm:$0xff] %vm614, 0.0
      %616 = vst.msk [vmem:[#allocation2 + $0x8] sm:$0xff] %vm614, 0.0
      %vm617 = vcmask 189440
      %618 = vst.msk [vmem:[#allocation2 + $0x10] sm:$0x3] %vm617, 0.0
      %s619 = scalar_lea.vmem [#allocation2], 408
      %620 = vst.msk [vmem:[%s619] sm:$0xff] %vm614, 0.0
      %621 = vst.msk [vmem:[%s619 + $0x8] sm:$0xff] %vm614, 0.0
      %622 = vst.msk [vmem:[%s619 + $0x10] sm:$0x3] %vm617, 0.0
      %s623 = scalar_lea.vmem [#allocation2], 24
      %vm624 = vcmask 188416
      %625 = vst.msk [vmem:[%s623] sm:$0x1] %vm624, 0.0
      %626 = vst.msk [vmem:[%s623 + $0x18] sm:$0x1] %vm624, 0.0
      %627 = vst.msk [vmem:[%s623 + $0x30] sm:$0x1] %vm624, 0.0
      %628 = vst.msk [vmem:[%s623 + $0x48] sm:$0x1] %vm624, 0.0
      %629 = vst.msk [vmem:[%s623 + $0x60] sm:$0x1] %vm624, 0.0
      %630 = vst.msk [vmem:[%s623 + $0x78] sm:$0x1] %vm624, 0.0
      %631 = vst.msk [vmem:[%s623 + $0x90] sm:$0x1] %vm624, 0.0
      %632 = vst.msk [vmem:[%s623 + $0xa8] sm:$0x1] %vm624, 0.0
      %633 = vst.msk [vmem:[%s623 + $0xc0] sm:$0x1] %vm624, 0.0
      %634 = vst.msk [vmem:[%s623 + $0xd8] sm:$0x1] %vm624, 0.0
      %635 = vst.msk [vmem:[%s623 + $0xf0] sm:$0x1] %vm624, 0.0
      %636 = vst.msk [vmem:[%s623 + $0x108] sm:$0x1] %vm624, 0.0
      %637 = vst.msk [vmem:[%s623 + $0x120] sm:$0x1] %vm624, 0.0
      %638 = vst.msk [vmem:[%s623 + $0x138] sm:$0x1] %vm624, 0.0
      %639 = vst.msk [vmem:[%s623 + $0x150] sm:$0x1] %vm624, 0.0
      %640 = vst.msk [vmem:[%s623 + $0x168] sm:$0x1] %vm624, 0.0
      %641 = vst.msk [vmem:[%s623 + $0x11] sm:$0x1] %vm624, 0.0
      %642 = vst.msk [vmem:[%s623 + $0x29] sm:$0x1] %vm624, 0.0
      %643 = vst.msk [vmem:[%s623 + $0x41] sm:$0x1] %vm624, 0.0
      %644 = vst.msk [vmem:[%s623 + $0x59] sm:$0x1] %vm624, 0.0
      %645 = vst.msk [vmem:[%s623 + $0x71] sm:$0x1] %vm624, 0.0
      %646 = vst.msk [vmem:[%s623 + $0x89] sm:$0x1] %vm624, 0.0
      %647 = vst.msk [vmem:[%s623 + $0xa1] sm:$0x1] %vm624, 0.0
      %648 = vst.msk [vmem:[%s623 + $0xb9] sm:$0x1] %vm624, 0.0
      %649 = vst.msk [vmem:[%s623 + $0xd1] sm:$0x1] %vm624, 0.0
      %650 = vst.msk [vmem:[%s623 + $0xe9] sm:$0x1] %vm624, 0.0
      %651 = vst.msk [vmem:[%s623 + $0x101] sm:$0x1] %vm624, 0.0
      %652 = vst.msk [vmem:[%s623 + $0x119] sm:$0x1] %vm624, 0.0
      %653 = vst.msk [vmem:[%s623 + $0x131] sm:$0x1] %vm624, 0.0
      %654 = vst.msk [vmem:[%s623 + $0x149] sm:$0x1] %vm624, 0.0
      %655 = vst.msk [vmem:[%s623 + $0x161] sm:$0x1] %vm624, 0.0
      %656 = vst.msk [vmem:[%s623 + $0x179] sm:$0x1] %vm624, 0.0
      %657 = vst.msk [vmem:[%s623 + $0x1] sm:$0xff] %vm614, %v582
      %658 = vst.msk [vmem:[%s623 + $0x9] sm:$0xff] %vm614, %v583
      %659 = vst.msk [vmem:[%s623 + $0x19] sm:$0xff] %vm614, %v584
      %660 = vst.msk [vmem:[%s623 + $0x21] sm:$0xff] %vm614, %v585
      %661 = vst.msk [vmem:[%s623 + $0x31] sm:$0xff] %vm614, %v586
      %662 = vst.msk [vmem:[%s623 + $0x39] sm:$0xff] %vm614, %v587
      %663 = vst.msk [vmem:[%s623 + $0x49] sm:$0xff] %vm614, %v588
      %664 = vst.msk [vmem:[%s623 + $0x51] sm:$0xff] %vm614, %v589
      %665 = vst.msk [vmem:[%s623 + $0x61] sm:$0xff] %vm614, %v590
      %666 = vst.msk [vmem:[%s623 + $0x69] sm:$0xff] %vm614, %v591
      %667 = vst.msk [vmem:[%s623 + $0x79] sm:$0xff] %vm614, %v592
      %668 = vst.msk [vmem:[%s623 + $0x81] sm:$0xff] %vm614, %v593
      %669 = vst.msk [vmem:[%s623 + $0x91] sm:$0xff] %vm614, %v594
      %670 = vst.msk [vmem:[%s623 + $0x99] sm:$0xff] %vm614, %v595
      %671 = vst.msk [vmem:[%s623 + $0xa9] sm:$0xff] %vm614, %v596
      %672 = vst.msk [vmem:[%s623 + $0xb1] sm:$0xff] %vm614, %v597
      %673 = vst.msk [vmem:[%s623 + $0xc1] sm:$0xff] %vm614, %v598
      %674 = vst.msk [vmem:[%s623 + $0xc9] sm:$0xff] %vm614, %v599
      %675 = vst.msk [vmem:[%s623 + $0xd9] sm:$0xff] %vm614, %v600
      %676 = vst.msk [vmem:[%s623 + $0xe1] sm:$0xff] %vm614, %v601
      %677 = vst.msk [vmem:[%s623 + $0xf1] sm:$0xff] %vm614, %v602
      %678 = vst.msk [vmem:[%s623 + $0xf9] sm:$0xff] %vm614, %v603
      %679 = vst.msk [vmem:[%s623 + $0x109] sm:$0xff] %vm614, %v604
      %680 = vst.msk [vmem:[%s623 + $0x111] sm:$0xff] %vm614, %v605
      %681 = vst.msk [vmem:[%s623 + $0x121] sm:$0xff] %vm614, %v606
      %682 = vst.msk [vmem:[%s623 + $0x129] sm:$0xff] %vm614, %v607
      %683 = vst.msk [vmem:[%s623 + $0x139] sm:$0xff] %vm614, %v608
      %684 = vst.msk [vmem:[%s623 + $0x141] sm:$0xff] %vm614, %v609
      %685 = vst.msk [vmem:[%s623 + $0x151] sm:$0xff] %vm614, %v610
      %686 = vst.msk [vmem:[%s623 + $0x159] sm:$0xff] %vm614, %v611
      %687 = vst.msk [vmem:[%s623 + $0x169] sm:$0xff] %vm614, %v612
      %688 = vst.msk [vmem:[%s623 + $0x171] sm:$0xff] %vm614, %v613
      %v689 = vld [vmem:[%s3] sm:$0x7]
      %v690 = vld [vmem:[%s3 + $0x4] sm:$0x7]
      %v691 = vld [vmem:[%s3 + $0x8] sm:$0x7]
      %v692 = vld [vmem:[#allocation2] sm:$0xff]
      %v693 = vld [vmem:[#allocation2 + $0x8] sm:$0xff]
      %v694 = vld [vmem:[#allocation2 + $0x18] sm:$0xff]
      %v695 = vld [vmem:[#allocation2 + $0x20] sm:$0xff]
      %v696 = vld [vmem:[#allocation2 + $0x30] sm:$0xff]
      %v697 = vld [vmem:[#allocation2 + $0x38] sm:$0xff]
      %v698 = vld [vmem:[#allocation2 + $0x48] sm:$0xff]
      %v699 = vld [vmem:[#allocation2 + $0x50] sm:$0xff]
      %v700 = vld [vmem:[#allocation2 + $0x60] sm:$0xff]
      %v701 = vld [vmem:[#allocation2 + $0x68] sm:$0xff]
      %v702 = vld [vmem:[#allocation2 + $0x78] sm:$0xff]
      %v703 = vld [vmem:[#allocation2 + $0x80] sm:$0xff]
      %v704 = vld [vmem:[#allocation2 + $0x90] sm:$0xff]
      %v705 = vld [vmem:[#allocation2 + $0x98] sm:$0xff]
      %v706 = vld [vmem:[#allocation2 + $0xa8] sm:$0xff]
      %v707 = vld [vmem:[#allocation2 + $0xb0] sm:$0xff]
      %v708 = vld [vmem:[#allocation2 + $0xc0] sm:$0xff]
      %v709 = vld [vmem:[#allocation2 + $0xc8] sm:$0xff]
      %v710 = vld [vmem:[#allocation2 + $0xd8] sm:$0xff]
      %v711 = vld [vmem:[#allocation2 + $0xe0] sm:$0xff]
      %v712 = vld [vmem:[#allocation2 + $0xf0] sm:$0xff]
      %v713 = vld [vmem:[#allocation2 + $0xf8] sm:$0xff]
      %v714 = vld [vmem:[#allocation2 + $0x108] sm:$0xff]
      %v715 = vld [vmem:[#allocation2 + $0x110] sm:$0xff]
      %v716 = vld [vmem:[#allocation2 + $0x120] sm:$0xff]
      %v717 = vld [vmem:[#allocation2 + $0x128] sm:$0xff]
      %v718 = vld [vmem:[#allocation2 + $0x138] sm:$0xff]
      %v719 = vld [vmem:[#allocation2 + $0x140] sm:$0xff]
      %v720 = vld [vmem:[#allocation2 + $0x150] sm:$0xff]
      %v721 = vld [vmem:[#allocation2 + $0x158] sm:$0xff]
      %v722 = vld [vmem:[#allocation2 + $0x168] sm:$0xff]
      %v723 = vld [vmem:[#allocation2 + $0x170] sm:$0xff]
      %v724 = vlaneseq
      %v725 = vshrl.u32 %v724, 7
      %v726 = vsub.s32 0, %v725
      %v727 = vrot.slane %v689, %v726
      %v728 = vmul.f32 %v692, %v727
      %v729 = vmul.f32 %v693, %v727
      %v730 = vmul.f32 %v694, %v727
      %v731 = vmul.f32 %v695, %v727
      %v732 = vmul.f32 %v696, %v727
      %v733 = vmul.f32 %v697, %v727
      %v734 = vmul.f32 %v698, %v727
      %v735 = vmul.f32 %v699, %v727
      %v736 = vmul.f32 %v700, %v727
      %v737 = vmul.f32 %v701, %v727
      %v738 = vmul.f32 %v702, %v727
      %v739 = vmul.f32 %v703, %v727
      %v740 = vmul.f32 %v704, %v727
      %v741 = vmul.f32 %v705, %v727
      %v742 = vmul.f32 %v706, %v727
      %v743 = vmul.f32 %v707, %v727
      %v744 = vmul.f32 %v708, %v727
      %v745 = vmul.f32 %v709, %v727
      %v746 = vmul.f32 %v710, %v727
      %v747 = vmul.f32 %v711, %v727
      %v748 = vmul.f32 %v712, %v727
      %v749 = vmul.f32 %v713, %v727
      %v750 = vmul.f32 %v714, %v727
      %v751 = vmul.f32 %v715, %v727
      %v752 = vmul.f32 %v716, %v727
      %v753 = vmul.f32 %v717, %v727
      %v754 = vmul.f32 %v718, %v727
      %v755 = vmul.f32 %v719, %v727
      %v756 = vmul.f32 %v720, %v727
      %v757 = vmul.f32 %v721, %v727
      %v758 = vmul.f32 %v722, %v727
      %v759 = vmul.f32 %v723, %v727
      %v760 = vld [vmem:[#allocation2 + $0x1] sm:$0xff]
      %v761 = vld [vmem:[#allocation2 + $0x9] sm:$0xff]
      %v762 = vld [vmem:[#allocation2 + $0x19] sm:$0xff]
      %v763 = vld [vmem:[#allocation2 + $0x21] sm:$0xff]
      %v764 = vld [vmem:[#allocation2 + $0x31] sm:$0xff]
      %v765 = vld [vmem:[#allocation2 + $0x39] sm:$0xff]
      %v766 = vld [vmem:[#allocation2 + $0x49] sm:$0xff]
      %v767 = vld [vmem:[#allocation2 + $0x51] sm:$0xff]
      %v768 = vld [vmem:[#allocation2 + $0x61] sm:$0xff]
      %v769 = vld [vmem:[#allocation2 + $0x69] sm:$0xff]
      %v770 = vld [vmem:[#allocation2 + $0x79] sm:$0xff]
      %v771 = vld [vmem:[#allocation2 + $0x81] sm:$0xff]
      %v772 = vld [vmem:[#allocation2 + $0x91] sm:$0xff]
      %v773 = vld [vmem:[#allocation2 + $0x99] sm:$0xff]
      %v774 = vld [vmem:[#allocation2 + $0xa9] sm:$0xff]
      %v775 = vld [vmem:[#allocation2 + $0xb1] sm:$0xff]
      %v776 = vld [vmem:[#allocation2 + $0xc1] sm:$0xff]
      %v777 = vld [vmem:[#allocation2 + $0xc9] sm:$0xff]
      %v778 = vld [vmem:[#allocation2 + $0xd9] sm:$0xff]
      %v779 = vld [vmem:[#allocation2 + $0xe1] sm:$0xff]
      %v780 = vld [vmem:[#allocation2 + $0xf1] sm:$0xff]
      %v781 = vld [vmem:[#allocation2 + $0xf9] sm:$0xff]
      %v782 = vld [vmem:[#allocation2 + $0x109] sm:$0xff]
      %v783 = vld [vmem:[#allocation2 + $0x111] sm:$0xff]
      %v784 = vld [vmem:[#allocation2 + $0x121] sm:$0xff]
      %v785 = vld [vmem:[#allocation2 + $0x129] sm:$0xff]
      %v786 = vld [vmem:[#allocation2 + $0x139] sm:$0xff]
      %v787 = vld [vmem:[#allocation2 + $0x141] sm:$0xff]
      %v788 = vld [vmem:[#allocation2 + $0x151] sm:$0xff]
      %v789 = vld [vmem:[#allocation2 + $0x159] sm:$0xff]
      %v790 = vld [vmem:[#allocation2 + $0x169] sm:$0xff]
      %v791 = vld [vmem:[#allocation2 + $0x171] sm:$0xff]
      %v792 = vlaneseq
      %v793 = vshrl.u32 %v792, 7
      %v794 = vsub.s32 1, %v793
      %v795 = vrot.slane %v689, %v794
      %v796 = vmul.f32 %v760, %v795
      %v797 = vmul.f32 %v761, %v795
      %v798 = vmul.f32 %v762, %v795
      %v799 = vmul.f32 %v763, %v795
      %v800 = vmul.f32 %v764, %v795
      %v801 = vmul.f32 %v765, %v795
      %v802 = vmul.f32 %v766, %v795
      %v803 = vmul.f32 %v767, %v795
      %v804 = vmul.f32 %v768, %v795
      %v805 = vmul.f32 %v769, %v795
      %v806 = vmul.f32 %v770, %v795
      %v807 = vmul.f32 %v771, %v795
      %v808 = vmul.f32 %v772, %v795
      %v809 = vmul.f32 %v773, %v795
      %v810 = vmul.f32 %v774, %v795
      %v811 = vmul.f32 %v775, %v795
      %v812 = vmul.f32 %v776, %v795
      %v813 = vmul.f32 %v777, %v795
      %v814 = vmul.f32 %v778, %v795
      %v815 = vmul.f32 %v779, %v795
      %v816 = vmul.f32 %v780, %v795
      %v817 = vmul.f32 %v781, %v795
      %v818 = vmul.f32 %v782, %v795
      %v819 = vmul.f32 %v783, %v795
      %v820 = vmul.f32 %v784, %v795
      %v821 = vmul.f32 %v785, %v795
      %v822 = vmul.f32 %v786, %v795
      %v823 = vmul.f32 %v787, %v795
      %v824 = vmul.f32 %v788, %v795
      %v825 = vmul.f32 %v789, %v795
      %v826 = vmul.f32 %v790, %v795
      %v827 = vmul.f32 %v791, %v795
      %v828 = vadd.f32 %v728, %v796
      %v829 = vadd.f32 %v729, %v797
      %v830 = vadd.f32 %v730, %v798
      %v831 = vadd.f32 %v731, %v799
      %v832 = vadd.f32 %v732, %v800
      %v833 = vadd.f32 %v733, %v801
      %v834 = vadd.f32 %v734, %v802
      %v835 = vadd.f32 %v735, %v803
      %v836 = vadd.f32 %v736, %v804
      %v837 = vadd.f32 %v737, %v805
      %v838 = vadd.f32 %v738, %v806
      %v839 = vadd.f32 %v739, %v807
      %v840 = vadd.f32 %v740, %v808
      %v841 = vadd.f32 %v741, %v809
      %v842 = vadd.f32 %v742, %v810
      %v843 = vadd.f32 %v743, %v811
      %v844 = vadd.f32 %v744, %v812
      %v845 = vadd.f32 %v745, %v813
      %v846 = vadd.f32 %v746, %v814
      %v847 = vadd.f32 %v747, %v815
      %v848 = vadd.f32 %v748, %v816
      %v849 = vadd.f32 %v749, %v817
      %v850 = vadd.f32 %v750, %v818
      %v851 = vadd.f32 %v751, %v819
      %v852 = vadd.f32 %v752, %v820
      %v853 = vadd.f32 %v753, %v821
      %v854 = vadd.f32 %v754, %v822
      %v855 = vadd.f32 %v755, %v823
      %v856 = vadd.f32 %v756, %v824
      %v857 = vadd.f32 %v757, %v825
      %v858 = vadd.f32 %v758, %v826
      %v859 = vadd.f32 %v759, %v827
      %v860 = vld [vmem:[#allocation2 + $0x2] sm:$0xff]
      %v861 = vld [vmem:[#allocation2 + $0xa] sm:$0xff]
      %v862 = vld [vmem:[#allocation2 + $0x1a] sm:$0xff]
      %v863 = vld [vmem:[#allocation2 + $0x22] sm:$0xff]
      %v864 = vld [vmem:[#allocation2 + $0x32] sm:$0xff]
      %v865 = vld [vmem:[#allocation2 + $0x3a] sm:$0xff]
      %v866 = vld [vmem:[#allocation2 + $0x4a] sm:$0xff]
      %v867 = vld [vmem:[#allocation2 + $0x52] sm:$0xff]
      %v868 = vld [vmem:[#allocation2 + $0x62] sm:$0xff]
      %v869 = vld [vmem:[#allocation2 + $0x6a] sm:$0xff]
      %v870 = vld [vmem:[#allocation2 + $0x7a] sm:$0xff]
      %v871 = vld [vmem:[#allocation2 + $0x82] sm:$0xff]
      %v872 = vld [vmem:[#allocation2 + $0x92] sm:$0xff]
      %v873 = vld [vmem:[#allocation2 + $0x9a] sm:$0xff]
      %v874 = vld [vmem:[#allocation2 + $0xaa] sm:$0xff]
      %v875 = vld [vmem:[#allocation2 + $0xb2] sm:$0xff]
      %v876 = vld [vmem:[#allocation2 + $0xc2] sm:$0xff]
      %v877 = vld [vmem:[#allocation2 + $0xca] sm:$0xff]
      %v878 = vld [vmem:[#allocation2 + $0xda] sm:$0xff]
      %v879 = vld [vmem:[#allocation2 + $0xe2] sm:$0xff]
      %v880 = vld [vmem:[#allocation2 + $0xf2] sm:$0xff]
      %v881 = vld [vmem:[#allocation2 + $0xfa] sm:$0xff]
      %v882 = vld [vmem:[#allocation2 + $0x10a] sm:$0xff]
      %v883 = vld [vmem:[#allocation2 + $0x112] sm:$0xff]
      %v884 = vld [vmem:[#allocation2 + $0x122] sm:$0xff]
      %v885 = vld [vmem:[#allocation2 + $0x12a] sm:$0xff]
      %v886 = vld [vmem:[#allocation2 + $0x13a] sm:$0xff]
      %v887 = vld [vmem:[#allocation2 + $0x142] sm:$0xff]
      %v888 = vld [vmem:[#allocation2 + $0x152] sm:$0xff]
      %v889 = vld [vmem:[#allocation2 + $0x15a] sm:$0xff]
      %v890 = vld [vmem:[#allocation2 + $0x16a] sm:$0xff]
      %v891 = vld [vmem:[#allocation2 + $0x172] sm:$0xff]
      %v892 = vlaneseq
      %v893 = vshrl.u32 %v892, 7
      %v894 = vsub.s32 2, %v893
      %v895 = vrot.slane %v689, %v894
      %v896 = vmul.f32 %v860, %v895
      %v897 = vmul.f32 %v861, %v895
      %v898 = vmul.f32 %v862, %v895
      %v899 = vmul.f32 %v863, %v895
      %v900 = vmul.f32 %v864, %v895
      %v901 = vmul.f32 %v865, %v895
      %v902 = vmul.f32 %v866, %v895
      %v903 = vmul.f32 %v867, %v895
      %v904 = vmul.f32 %v868, %v895
      %v905 = vmul.f32 %v869, %v895
      %v906 = vmul.f32 %v870, %v895
      %v907 = vmul.f32 %v871, %v895
      %v908 = vmul.f32 %v872, %v895
      %v909 = vmul.f32 %v873, %v895
      %v910 = vmul.f32 %v874, %v895
      %v911 = vmul.f32 %v875, %v895
      %v912 = vmul.f32 %v876, %v895
      %v913 = vmul.f32 %v877, %v895
      %v914 = vmul.f32 %v878, %v895
      %v915 = vmul.f32 %v879, %v895
      %v916 = vmul.f32 %v880, %v895
      %v917 = vmul.f32 %v881, %v895
      %v918 = vmul.f32 %v882, %v895
      %v919 = vmul.f32 %v883, %v895
      %v920 = vmul.f32 %v884, %v895
      %v921 = vmul.f32 %v885, %v895
      %v922 = vmul.f32 %v886, %v895
      %v923 = vmul.f32 %v887, %v895
      %v924 = vmul.f32 %v888, %v895
      %v925 = vmul.f32 %v889, %v895
      %v926 = vmul.f32 %v890, %v895
      %v927 = vmul.f32 %v891, %v895
      %v928 = vadd.f32 %v828, %v896
      %v929 = vadd.f32 %v829, %v897
      %v930 = vadd.f32 %v830, %v898
      %v931 = vadd.f32 %v831, %v899
      %v932 = vadd.f32 %v832, %v900
      %v933 = vadd.f32 %v833, %v901
      %v934 = vadd.f32 %v834, %v902
      %v935 = vadd.f32 %v835, %v903
      %v936 = vadd.f32 %v836, %v904
      %v937 = vadd.f32 %v837, %v905
      %v938 = vadd.f32 %v838, %v906
      %v939 = vadd.f32 %v839, %v907
      %v940 = vadd.f32 %v840, %v908
      %v941 = vadd.f32 %v841, %v909
      %v942 = vadd.f32 %v842, %v910
      %v943 = vadd.f32 %v843, %v911
      %v944 = vadd.f32 %v844, %v912
      %v945 = vadd.f32 %v845, %v913
      %v946 = vadd.f32 %v846, %v914
      %v947 = vadd.f32 %v847, %v915
      %v948 = vadd.f32 %v848, %v916
      %v949 = vadd.f32 %v849, %v917
      %v950 = vadd.f32 %v850, %v918
      %v951 = vadd.f32 %v851, %v919
      %v952 = vadd.f32 %v852, %v920
      %v953 = vadd.f32 %v853, %v921
      %v954 = vadd.f32 %v854, %v922
      %v955 = vadd.f32 %v855, %v923
      %v956 = vadd.f32 %v856, %v924
      %v957 = vadd.f32 %v857, %v925
      %v958 = vadd.f32 %v858, %v926
      %v959 = vadd.f32 %v859, %v927
      %v960 = vld [vmem:[%s623] sm:$0xff]
      %v961 = vld [vmem:[%s623 + $0x8] sm:$0xff]
      %v962 = vld [vmem:[%s623 + $0x18] sm:$0xff]
      %v963 = vld [vmem:[%s623 + $0x20] sm:$0xff]
      %v964 = vld [vmem:[%s623 + $0x30] sm:$0xff]
      %v965 = vld [vmem:[%s623 + $0x38] sm:$0xff]
      %v966 = vld [vmem:[%s623 + $0x48] sm:$0xff]
      %v967 = vld [vmem:[%s623 + $0x50] sm:$0xff]
      %v968 = vld [vmem:[%s623 + $0x60] sm:$0xff]
      %v969 = vld [vmem:[%s623 + $0x68] sm:$0xff]
      %v970 = vld [vmem:[%s623 + $0x78] sm:$0xff]
      %v971 = vld [vmem:[%s623 + $0x80] sm:$0xff]
      %v972 = vld [vmem:[%s623 + $0x90] sm:$0xff]
      %v973 = vld [vmem:[%s623 + $0x98] sm:$0xff]
      %v974 = vld [vmem:[%s623 + $0xa8] sm:$0xff]
      %v975 = vld [vmem:[%s623 + $0xb0] sm:$0xff]
      %v976 = vld [vmem:[%s623 + $0xc0] sm:$0xff]
      %v977 = vld [vmem:[%s623 + $0xc8] sm:$0xff]
      %v978 = vld [vmem:[%s623 + $0xd8] sm:$0xff]
      %v979 = vld [vmem:[%s623 + $0xe0] sm:$0xff]
      %v980 = vld [vmem:[%s623 + $0xf0] sm:$0xff]
      %v981 = vld [vmem:[%s623 + $0xf8] sm:$0xff]
      %v982 = vld [vmem:[%s623 + $0x108] sm:$0xff]
      %v983 = vld [vmem:[%s623 + $0x110] sm:$0xff]
      %v984 = vld [vmem:[%s623 + $0x120] sm:$0xff]
      %v985 = vld [vmem:[%s623 + $0x128] sm:$0xff]
      %v986 = vld [vmem:[%s623 + $0x138] sm:$0xff]
      %v987 = vld [vmem:[%s623 + $0x140] sm:$0xff]
      %v988 = vld [vmem:[%s623 + $0x150] sm:$0xff]
      %v989 = vld [vmem:[%s623 + $0x158] sm:$0xff]
      %v990 = vld [vmem:[%s623 + $0x168] sm:$0xff]
      %v991 = vld [vmem:[%s623 + $0x170] sm:$0xff]
      %v992 = vlaneseq
      %v993 = vshrl.u32 %v992, 7
      %v994 = vsub.s32 0, %v993
      %v995 = vrot.slane %v690, %v994
      %v996 = vmul.f32 %v960, %v995
      %v997 = vmul.f32 %v961, %v995
      %v998 = vmul.f32 %v962, %v995
      %v999 = vmul.f32 %v963, %v995
      %v1000 = vmul.f32 %v964, %v995
      %v1001 = vmul.f32 %v965, %v995
      %v1002 = vmul.f32 %v966, %v995
      %v1003 = vmul.f32 %v967, %v995
      %v1004 = vmul.f32 %v968, %v995
      %v1005 = vmul.f32 %v969, %v995
      %v1006 = vmul.f32 %v970, %v995
      %v1007 = vmul.f32 %v971, %v995
      %v1008 = vmul.f32 %v972, %v995
      %v1009 = vmul.f32 %v973, %v995
      %v1010 = vmul.f32 %v974, %v995
      %v1011 = vmul.f32 %v975, %v995
      %v1012 = vmul.f32 %v976, %v995
      %v1013 = vmul.f32 %v977, %v995
      %v1014 = vmul.f32 %v978, %v995
      %v1015 = vmul.f32 %v979, %v995
      %v1016 = vmul.f32 %v980, %v995
      %v1017 = vmul.f32 %v981, %v995
      %v1018 = vmul.f32 %v982, %v995
      %v1019 = vmul.f32 %v983, %v995
      %v1020 = vmul.f32 %v984, %v995
      %v1021 = vmul.f32 %v985, %v995
      %v1022 = vmul.f32 %v986, %v995
      %v1023 = vmul.f32 %v987, %v995
      %v1024 = vmul.f32 %v988, %v995
      %v1025 = vmul.f32 %v989, %v995
      %v1026 = vmul.f32 %v990, %v995
      %v1027 = vmul.f32 %v991, %v995
      %v1028 = vadd.f32 %v928, %v996
      %v1029 = vadd.f32 %v929, %v997
      %v1030 = vadd.f32 %v930, %v998
      %v1031 = vadd.f32 %v931, %v999
      %v1032 = vadd.f32 %v932, %v1000
      %v1033 = vadd.f32 %v933, %v1001
      %v1034 = vadd.f32 %v934, %v1002
      %v1035 = vadd.f32 %v935, %v1003
      %v1036 = vadd.f32 %v936, %v1004
      %v1037 = vadd.f32 %v937, %v1005
      %v1038 = vadd.f32 %v938, %v1006
      %v1039 = vadd.f32 %v939, %v1007
      %v1040 = vadd.f32 %v940, %v1008
      %v1041 = vadd.f32 %v941, %v1009
      %v1042 = vadd.f32 %v942, %v1010
      %v1043 = vadd.f32 %v943, %v1011
      %v1044 = vadd.f32 %v944, %v1012
      %v1045 = vadd.f32 %v945, %v1013
      %v1046 = vadd.f32 %v946, %v1014
      %v1047 = vadd.f32 %v947, %v1015
      %v1048 = vadd.f32 %v948, %v1016
      %v1049 = vadd.f32 %v949, %v1017
      %v1050 = vadd.f32 %v950, %v1018
      %v1051 = vadd.f32 %v951, %v1019
      %v1052 = vadd.f32 %v952, %v1020
      %v1053 = vadd.f32 %v953, %v1021
      %v1054 = vadd.f32 %v954, %v1022
      %v1055 = vadd.f32 %v955, %v1023
      %v1056 = vadd.f32 %v956, %v1024
      %v1057 = vadd.f32 %v957, %v1025
      %v1058 = vadd.f32 %v958, %v1026
      %v1059 = vadd.f32 %v959, %v1027
      %v1060 = vld [vmem:[%s623 + $0x1] sm:$0xff]
      %v1061 = vld [vmem:[%s623 + $0x9] sm:$0xff]
      %v1062 = vld [vmem:[%s623 + $0x19] sm:$0xff]
      %v1063 = vld [vmem:[%s623 + $0x21] sm:$0xff]
      %v1064 = vld [vmem:[%s623 + $0x31] sm:$0xff]
      %v1065 = vld [vmem:[%s623 + $0x39] sm:$0xff]
      %v1066 = vld [vmem:[%s623 + $0x49] sm:$0xff]
      %v1067 = vld [vmem:[%s623 + $0x51] sm:$0xff]
      %v1068 = vld [vmem:[%s623 + $0x61] sm:$0xff]
      %v1069 = vld [vmem:[%s623 + $0x69] sm:$0xff]
      %v1070 = vld [vmem:[%s623 + $0x79] sm:$0xff]
      %v1071 = vld [vmem:[%s623 + $0x81] sm:$0xff]
      %v1072 = vld [vmem:[%s623 + $0x91] sm:$0xff]
      %v1073 = vld [vmem:[%s623 + $0x99] sm:$0xff]
      %v1074 = vld [vmem:[%s623 + $0xa9] sm:$0xff]
      %v1075 = vld [vmem:[%s623 + $0xb1] sm:$0xff]
      %v1076 = vld [vmem:[%s623 + $0xc1] sm:$0xff]
      %v1077 = vld [vmem:[%s623 + $0xc9] sm:$0xff]
      %v1078 = vld [vmem:[%s623 + $0xd9] sm:$0xff]
      %v1079 = vld [vmem:[%s623 + $0xe1] sm:$0xff]
      %v1080 = vld [vmem:[%s623 + $0xf1] sm:$0xff]
      %v1081 = vld [vmem:[%s623 + $0xf9] sm:$0xff]
      %v1082 = vld [vmem:[%s623 + $0x109] sm:$0xff]
      %v1083 = vld [vmem:[%s623 + $0x111] sm:$0xff]
      %v1084 = vld [vmem:[%s623 + $0x121] sm:$0xff]
      %v1085 = vld [vmem:[%s623 + $0x129] sm:$0xff]
      %v1086 = vld [vmem:[%s623 + $0x139] sm:$0xff]
      %v1087 = vld [vmem:[%s623 + $0x141] sm:$0xff]
      %v1088 = vld [vmem:[%s623 + $0x151] sm:$0xff]
      %v1089 = vld [vmem:[%s623 + $0x159] sm:$0xff]
      %v1090 = vld [vmem:[%s623 + $0x169] sm:$0xff]
      %v1091 = vld [vmem:[%s623 + $0x171] sm:$0xff]
      %v1092 = vlaneseq
      %v1093 = vshrl.u32 %v1092, 7
      %v1094 = vsub.s32 1, %v1093
      %v1095 = vrot.slane %v690, %v1094
      %v1096 = vmul.f32 %v1060, %v1095
      %v1097 = vmul.f32 %v1061, %v1095
      %v1098 = vmul.f32 %v1062, %v1095
      %v1099 = vmul.f32 %v1063, %v1095
      %v1100 = vmul.f32 %v1064, %v1095
      %v1101 = vmul.f32 %v1065, %v1095
      %v1102 = vmul.f32 %v1066, %v1095
      %v1103 = vmul.f32 %v1067, %v1095
      %v1104 = vmul.f32 %v1068, %v1095
      %v1105 = vmul.f32 %v1069, %v1095
      %v1106 = vmul.f32 %v1070, %v1095
      %v1107 = vmul.f32 %v1071, %v1095
      %v1108 = vmul.f32 %v1072, %v1095
      %v1109 = vmul.f32 %v1073, %v1095
      %v1110 = vmul.f32 %v1074, %v1095
      %v1111 = vmul.f32 %v1075, %v1095
      %v1112 = vmul.f32 %v1076, %v1095
      %v1113 = vmul.f32 %v1077, %v1095
      %v1114 = vmul.f32 %v1078, %v1095
      %v1115 = vmul.f32 %v1079, %v1095
      %v1116 = vmul.f32 %v1080, %v1095
      %v1117 = vmul.f32 %v1081, %v1095
      %v1118 = vmul.f32 %v1082, %v1095
      %v1119 = vmul.f32 %v1083, %v1095
      %v1120 = vmul.f32 %v1084, %v1095
      %v1121 = vmul.f32 %v1085, %v1095
      %v1122 = vmul.f32 %v1086, %v1095
      %v1123 = vmul.f32 %v1087, %v1095
      %v1124 = vmul.f32 %v1088, %v1095
      %v1125 = vmul.f32 %v1089, %v1095
      %v1126 = vmul.f32 %v1090, %v1095
      %v1127 = vmul.f32 %v1091, %v1095
      %v1128 = vadd.f32 %v1028, %v1096
      %v1129 = vadd.f32 %v1029, %v1097
      %v1130 = vadd.f32 %v1030, %v1098
      %v1131 = vadd.f32 %v1031, %v1099
      %v1132 = vadd.f32 %v1032, %v1100
      %v1133 = vadd.f32 %v1033, %v1101
      %v1134 = vadd.f32 %v1034, %v1102
      %v1135 = vadd.f32 %v1035, %v1103
      %v1136 = vadd.f32 %v1036, %v1104
      %v1137 = vadd.f32 %v1037, %v1105
      %v1138 = vadd.f32 %v1038, %v1106
      %v1139 = vadd.f32 %v1039, %v1107
      %v1140 = vadd.f32 %v1040, %v1108
      %v1141 = vadd.f32 %v1041, %v1109
      %v1142 = vadd.f32 %v1042, %v1110
      %v1143 = vadd.f32 %v1043, %v1111
      %v1144 = vadd.f32 %v1044, %v1112
      %v1145 = vadd.f32 %v1045, %v1113
      %v1146 = vadd.f32 %v1046, %v1114
      %v1147 = vadd.f32 %v1047, %v1115
      %v1148 = vadd.f32 %v1048, %v1116
      %v1149 = vadd.f32 %v1049, %v1117
      %v1150 = vadd.f32 %v1050, %v1118
      %v1151 = vadd.f32 %v1051, %v1119
      %v1152 = vadd.f32 %v1052, %v1120
      %v1153 = vadd.f32 %v1053, %v1121
      %v1154 = vadd.f32 %v1054, %v1122
      %v1155 = vadd.f32 %v1055, %v1123
      %v1156 = vadd.f32 %v1056, %v1124
      %v1157 = vadd.f32 %v1057, %v1125
      %v1158 = vadd.f32 %v1058, %v1126
      %v1159 = vadd.f32 %v1059, %v1127
      %v1160 = vld [vmem:[%s623 + $0x2] sm:$0xff]
      %v1161 = vld [vmem:[%s623 + $0xa] sm:$0xff]
      %v1162 = vld [vmem:[%s623 + $0x1a] sm:$0xff]
      %v1163 = vld [vmem:[%s623 + $0x22] sm:$0xff]
      %v1164 = vld [vmem:[%s623 + $0x32] sm:$0xff]
      %v1165 = vld [vmem:[%s623 + $0x3a] sm:$0xff]
      %v1166 = vld [vmem:[%s623 + $0x4a] sm:$0xff]
      %v1167 = vld [vmem:[%s623 + $0x52] sm:$0xff]
      %v1168 = vld [vmem:[%s623 + $0x62] sm:$0xff]
      %v1169 = vld [vmem:[%s623 + $0x6a] sm:$0xff]
      %v1170 = vld [vmem:[%s623 + $0x7a] sm:$0xff]
      %v1171 = vld [vmem:[%s623 + $0x82] sm:$0xff]
      %v1172 = vld [vmem:[%s623 + $0x92] sm:$0xff]
      %v1173 = vld [vmem:[%s623 + $0x9a] sm:$0xff]
      %v1174 = vld [vmem:[%s623 + $0xaa] sm:$0xff]
      %v1175 = vld [vmem:[%s623 + $0xb2] sm:$0xff]
      %v1176 = vld [vmem:[%s623 + $0xc2] sm:$0xff]
      %v1177 = vld [vmem:[%s623 + $0xca] sm:$0xff]
      %v1178 = vld [vmem:[%s623 + $0xda] sm:$0xff]
      %v1179 = vld [vmem:[%s623 + $0xe2] sm:$0xff]
      %v1180 = vld [vmem:[%s623 + $0xf2] sm:$0xff]
      %v1181 = vld [vmem:[%s623 + $0xfa] sm:$0xff]
      %v1182 = vld [vmem:[%s623 + $0x10a] sm:$0xff]
      %v1183 = vld [vmem:[%s623 + $0x112] sm:$0xff]
      %v1184 = vld [vmem:[%s623 + $0x122] sm:$0xff]
      %v1185 = vld [vmem:[%s623 + $0x12a] sm:$0xff]
      %v1186 = vld [vmem:[%s623 + $0x13a] sm:$0xff]
      %v1187 = vld [vmem:[%s623 + $0x142] sm:$0xff]
      %v1188 = vld [vmem:[%s623 + $0x152] sm:$0xff]
      %v1189 = vld [vmem:[%s623 + $0x15a] sm:$0xff]
      %v1190 = vld [vmem:[%s623 + $0x16a] sm:$0xff]
      %v1191 = vld [vmem:[%s623 + $0x172] sm:$0xff]
      %v1192 = vlaneseq
      %v1193 = vshrl.u32 %v1192, 7
      %v1194 = vsub.s32 2, %v1193
      %v1195 = vrot.slane %v690, %v1194
      %v1196 = vmul.f32 %v1160, %v1195
      %v1197 = vmul.f32 %v1161, %v1195
      %v1198 = vmul.f32 %v1162, %v1195
      %v1199 = vmul.f32 %v1163, %v1195
      %v1200 = vmul.f32 %v1164, %v1195
      %v1201 = vmul.f32 %v1165, %v1195
      %v1202 = vmul.f32 %v1166, %v1195
      %v1203 = vmul.f32 %v1167, %v1195
      %v1204 = vmul.f32 %v1168, %v1195
      %v1205 = vmul.f32 %v1169, %v1195
      %v1206 = vmul.f32 %v1170, %v1195
      %v1207 = vmul.f32 %v1171, %v1195
      %v1208 = vmul.f32 %v1172, %v1195
      %v1209 = vmul.f32 %v1173, %v1195
      %v1210 = vmul.f32 %v1174, %v1195
      %v1211 = vmul.f32 %v1175, %v1195
      %v1212 = vmul.f32 %v1176, %v1195
      %v1213 = vmul.f32 %v1177, %v1195
      %v1214 = vmul.f32 %v1178, %v1195
      %v1215 = vmul.f32 %v1179, %v1195
      %v1216 = vmul.f32 %v1180, %v1195
      %v1217 = vmul.f32 %v1181, %v1195
      %v1218 = vmul.f32 %v1182, %v1195
      %v1219 = vmul.f32 %v1183, %v1195
      %v1220 = vmul.f32 %v1184, %v1195
      %v1221 = vmul.f32 %v1185, %v1195
      %v1222 = vmul.f32 %v1186, %v1195
      %v1223 = vmul.f32 %v1187, %v1195
      %v1224 = vmul.f32 %v1188, %v1195
      %v1225 = vmul.f32 %v1189, %v1195
      %v1226 = vmul.f32 %v1190, %v1195
      %v1227 = vmul.f32 %v1191, %v1195
      %v1228 = vadd.f32 %v1128, %v1196
      %v1229 = vadd.f32 %v1129, %v1197
      %v1230 = vadd.f32 %v1130, %v1198
      %v1231 = vadd.f32 %v1131, %v1199
      %v1232 = vadd.f32 %v1132, %v1200
      %v1233 = vadd.f32 %v1133, %v1201
      %v1234 = vadd.f32 %v1134, %v1202
      %v1235 = vadd.f32 %v1135, %v1203
      %v1236 = vadd.f32 %v1136, %v1204
      %v1237 = vadd.f32 %v1137, %v1205
      %v1238 = vadd.f32 %v1138, %v1206
      %v1239 = vadd.f32 %v1139, %v1207
      %v1240 = vadd.f32 %v1140, %v1208
      %v1241 = vadd.f32 %v1141, %v1209
      %v1242 = vadd.f32 %v1142, %v1210
      %v1243 = vadd.f32 %v1143, %v1211
      %v1244 = vadd.f32 %v1144, %v1212
      %v1245 = vadd.f32 %v1145, %v1213
      %v1246 = vadd.f32 %v1146, %v1214
      %v1247 = vadd.f32 %v1147, %v1215
      %v1248 = vadd.f32 %v1148, %v1216
      %v1249 = vadd.f32 %v1149, %v1217
      %v1250 = vadd.f32 %v1150, %v1218
      %v1251 = vadd.f32 %v1151, %v1219
      %v1252 = vadd.f32 %v1152, %v1220
      %v1253 = vadd.f32 %v1153, %v1221
      %v1254 = vadd.f32 %v1154, %v1222
      %v1255 = vadd.f32 %v1155, %v1223
      %v1256 = vadd.f32 %v1156, %v1224
      %v1257 = vadd.f32 %v1157, %v1225
      %v1258 = vadd.f32 %v1158, %v1226
      %v1259 = vadd.f32 %v1159, %v1227
      %s1260 = scalar_lea.vmem [#allocation2], 48
      %v1261 = vld [vmem:[%s1260] sm:$0xff]
      %v1262 = vld [vmem:[%s1260 + $0x8] sm:$0xff]
      %v1263 = vld [vmem:[%s1260 + $0x18] sm:$0xff]
      %v1264 = vld [vmem:[%s1260 + $0x20] sm:$0xff]
      %v1265 = vld [vmem:[%s1260 + $0x30] sm:$0xff]
      %v1266 = vld [vmem:[%s1260 + $0x38] sm:$0xff]
      %v1267 = vld [vmem:[%s1260 + $0x48] sm:$0xff]
      %v1268 = vld [vmem:[%s1260 + $0x50] sm:$0xff]
      %v1269 = vld [vmem:[%s1260 + $0x60] sm:$0xff]
      %v1270 = vld [vmem:[%s1260 + $0x68] sm:$0xff]
      %v1271 = vld [vmem:[%s1260 + $0x78] sm:$0xff]
      %v1272 = vld [vmem:[%s1260 + $0x80] sm:$0xff]
      %v1273 = vld [vmem:[%s1260 + $0x90] sm:$0xff]
      %v1274 = vld [vmem:[%s1260 + $0x98] sm:$0xff]
      %v1275 = vld [vmem:[%s1260 + $0xa8] sm:$0xff]
      %v1276 = vld [vmem:[%s1260 + $0xb0] sm:$0xff]
      %v1277 = vld [vmem:[%s1260 + $0xc0] sm:$0xff]
      %v1278 = vld [vmem:[%s1260 + $0xc8] sm:$0xff]
      %v1279 = vld [vmem:[%s1260 + $0xd8] sm:$0xff]
      %v1280 = vld [vmem:[%s1260 + $0xe0] sm:$0xff]
      %v1281 = vld [vmem:[%s1260 + $0xf0] sm:$0xff]
      %v1282 = vld [vmem:[%s1260 + $0xf8] sm:$0xff]
      %v1283 = vld [vmem:[%s1260 + $0x108] sm:$0xff]
      %v1284 = vld [vmem:[%s1260 + $0x110] sm:$0xff]
      %v1285 = vld [vmem:[%s1260 + $0x120] sm:$0xff]
      %v1286 = vld [vmem:[%s1260 + $0x128] sm:$0xff]
      %v1287 = vld [vmem:[%s1260 + $0x138] sm:$0xff]
      %v1288 = vld [vmem:[%s1260 + $0x140] sm:$0xff]
      %v1289 = vld [vmem:[%s1260 + $0x150] sm:$0xff]
      %v1290 = vld [vmem:[%s1260 + $0x158] sm:$0xff]
      %v1291 = vld [vmem:[%s1260 + $0x168] sm:$0xff]
      %v1292 = vld [vmem:[%s1260 + $0x170] sm:$0xff]
      %v1293 = vlaneseq
      %v1294 = vshrl.u32 %v1293, 7
      %v1295 = vsub.s32 0, %v1294
      %v1296 = vrot.slane %v691, %v1295
      %v1297 = vmul.f32 %v1261, %v1296
      %v1298 = vmul.f32 %v1262, %v1296
      %v1299 = vmul.f32 %v1263, %v1296
      %v1300 = vmul.f32 %v1264, %v1296
      %v1301 = vmul.f32 %v1265, %v1296
      %v1302 = vmul.f32 %v1266, %v1296
      %v1303 = vmul.f32 %v1267, %v1296
      %v1304 = vmul.f32 %v1268, %v1296
      %v1305 = vmul.f32 %v1269, %v1296
      %v1306 = vmul.f32 %v1270, %v1296
      %v1307 = vmul.f32 %v1271, %v1296
      %v1308 = vmul.f32 %v1272, %v1296
      %v1309 = vmul.f32 %v1273, %v1296
      %v1310 = vmul.f32 %v1274, %v1296
      %v1311 = vmul.f32 %v1275, %v1296
      %v1312 = vmul.f32 %v1276, %v1296
      %v1313 = vmul.f32 %v1277, %v1296
      %v1314 = vmul.f32 %v1278, %v1296
      %v1315 = vmul.f32 %v1279, %v1296
      %v1316 = vmul.f32 %v1280, %v1296
      %v1317 = vmul.f32 %v1281, %v1296
      %v1318 = vmul.f32 %v1282, %v1296
      %v1319 = vmul.f32 %v1283, %v1296
      %v1320 = vmul.f32 %v1284, %v1296
      %v1321 = vmul.f32 %v1285, %v1296
      %v1322 = vmul.f32 %v1286, %v1296
      %v1323 = vmul.f32 %v1287, %v1296
      %v1324 = vmul.f32 %v1288, %v1296
      %v1325 = vmul.f32 %v1289, %v1296
      %v1326 = vmul.f32 %v1290, %v1296
      %v1327 = vmul.f32 %v1291, %v1296
      %v1328 = vmul.f32 %v1292, %v1296
      %v1329 = vadd.f32 %v1228, %v1297
      %v1330 = vadd.f32 %v1229, %v1298
      %v1331 = vadd.f32 %v1230, %v1299
      %v1332 = vadd.f32 %v1231, %v1300
      %v1333 = vadd.f32 %v1232, %v1301
      %v1334 = vadd.f32 %v1233, %v1302
      %v1335 = vadd.f32 %v1234, %v1303
      %v1336 = vadd.f32 %v1235, %v1304
      %v1337 = vadd.f32 %v1236, %v1305
      %v1338 = vadd.f32 %v1237, %v1306
      %v1339 = vadd.f32 %v1238, %v1307
      %v1340 = vadd.f32 %v1239, %v1308
      %v1341 = vadd.f32 %v1240, %v1309
      %v1342 = vadd.f32 %v1241, %v1310
      %v1343 = vadd.f32 %v1242, %v1311
      %v1344 = vadd.f32 %v1243, %v1312
      %v1345 = vadd.f32 %v1244, %v1313
      %v1346 = vadd.f32 %v1245, %v1314
      %v1347 = vadd.f32 %v1246, %v1315
      %v1348 = vadd.f32 %v1247, %v1316
      %v1349 = vadd.f32 %v1248, %v1317
      %v1350 = vadd.f32 %v1249, %v1318
      %v1351 = vadd.f32 %v1250, %v1319
      %v1352 = vadd.f32 %v1251, %v1320
      %v1353 = vadd.f32 %v1252, %v1321
      %v1354 = vadd.f32 %v1253, %v1322
      %v1355 = vadd.f32 %v1254, %v1323
      %v1356 = vadd.f32 %v1255, %v1324
      %v1357 = vadd.f32 %v1256, %v1325
      %v1358 = vadd.f32 %v1257, %v1326
      %v1359 = vadd.f32 %v1258, %v1327
      %v1360 = vadd.f32 %v1259, %v1328
      %v1361 = vld [vmem:[%s1260 + $0x1] sm:$0xff]
      %v1362 = vld [vmem:[%s1260 + $0x9] sm:$0xff]
      %v1363 = vld [vmem:[%s1260 + $0x19] sm:$0xff]
      %v1364 = vld [vmem:[%s1260 + $0x21] sm:$0xff]
      %v1365 = vld [vmem:[%s1260 + $0x31] sm:$0xff]
      %v1366 = vld [vmem:[%s1260 + $0x39] sm:$0xff]
      %v1367 = vld [vmem:[%s1260 + $0x49] sm:$0xff]
      %v1368 = vld [vmem:[%s1260 + $0x51] sm:$0xff]
      %v1369 = vld [vmem:[%s1260 + $0x61] sm:$0xff]
      %v1370 = vld [vmem:[%s1260 + $0x69] sm:$0xff]
      %v1371 = vld [vmem:[%s1260 + $0x79] sm:$0xff]
      %v1372 = vld [vmem:[%s1260 + $0x81] sm:$0xff]
      %v1373 = vld [vmem:[%s1260 + $0x91] sm:$0xff]
      %v1374 = vld [vmem:[%s1260 + $0x99] sm:$0xff]
      %v1375 = vld [vmem:[%s1260 + $0xa9] sm:$0xff]
      %v1376 = vld [vmem:[%s1260 + $0xb1] sm:$0xff]
      %v1377 = vld [vmem:[%s1260 + $0xc1] sm:$0xff]
      %v1378 = vld [vmem:[%s1260 + $0xc9] sm:$0xff]
      %v1379 = vld [vmem:[%s1260 + $0xd9] sm:$0xff]
      %v1380 = vld [vmem:[%s1260 + $0xe1] sm:$0xff]
      %v1381 = vld [vmem:[%s1260 + $0xf1] sm:$0xff]
      %v1382 = vld [vmem:[%s1260 + $0xf9] sm:$0xff]
      %v1383 = vld [vmem:[%s1260 + $0x109] sm:$0xff]
      %v1384 = vld [vmem:[%s1260 + $0x111] sm:$0xff]
      %v1385 = vld [vmem:[%s1260 + $0x121] sm:$0xff]
      %v1386 = vld [vmem:[%s1260 + $0x129] sm:$0xff]
      %v1387 = vld [vmem:[%s1260 + $0x139] sm:$0xff]
      %v1388 = vld [vmem:[%s1260 + $0x141] sm:$0xff]
      %v1389 = vld [vmem:[%s1260 + $0x151] sm:$0xff]
      %v1390 = vld [vmem:[%s1260 + $0x159] sm:$0xff]
      %v1391 = vld [vmem:[%s1260 + $0x169] sm:$0xff]
      %v1392 = vld [vmem:[%s1260 + $0x171] sm:$0xff]
      %v1393 = vlaneseq
      %v1394 = vshrl.u32 %v1393, 7
      %v1395 = vsub.s32 1, %v1394
      %v1396 = vrot.slane %v691, %v1395
      %v1397 = vmul.f32 %v1361, %v1396
      %v1398 = vmul.f32 %v1362, %v1396
      %v1399 = vmul.f32 %v1363, %v1396
      %v1400 = vmul.f32 %v1364, %v1396
      %v1401 = vmul.f32 %v1365, %v1396
      %v1402 = vmul.f32 %v1366, %v1396
      %v1403 = vmul.f32 %v1367, %v1396
      %v1404 = vmul.f32 %v1368, %v1396
      %v1405 = vmul.f32 %v1369, %v1396
      %v1406 = vmul.f32 %v1370, %v1396
      %v1407 = vmul.f32 %v1371, %v1396
      %v1408 = vmul.f32 %v1372, %v1396
      %v1409 = vmul.f32 %v1373, %v1396
      %v1410 = vmul.f32 %v1374, %v1396
      %v1411 = vmul.f32 %v1375, %v1396
      %v1412 = vmul.f32 %v1376, %v1396
      %v1413 = vmul.f32 %v1377, %v1396
      %v1414 = vmul.f32 %v1378, %v1396
      %v1415 = vmul.f32 %v1379, %v1396
      %v1416 = vmul.f32 %v1380, %v1396
      %v1417 = vmul.f32 %v1381, %v1396
      %v1418 = vmul.f32 %v1382, %v1396
      %v1419 = vmul.f32 %v1383, %v1396
      %v1420 = vmul.f32 %v1384, %v1396
      %v1421 = vmul.f32 %v1385, %v1396
      %v1422 = vmul.f32 %v1386, %v1396
      %v1423 = vmul.f32 %v1387, %v1396
      %v1424 = vmul.f32 %v1388, %v1396
      %v1425 = vmul.f32 %v1389, %v1396
      %v1426 = vmul.f32 %v1390, %v1396
      %v1427 = vmul.f32 %v1391, %v1396
      %v1428 = vmul.f32 %v1392, %v1396
      %v1429 = vadd.f32 %v1329, %v1397
      %v1430 = vadd.f32 %v1330, %v1398
      %v1431 = vadd.f32 %v1331, %v1399
      %v1432 = vadd.f32 %v1332, %v1400
      %v1433 = vadd.f32 %v1333, %v1401
      %v1434 = vadd.f32 %v1334, %v1402
      %v1435 = vadd.f32 %v1335, %v1403
      %v1436 = vadd.f32 %v1336, %v1404
      %v1437 = vadd.f32 %v1337, %v1405
      %v1438 = vadd.f32 %v1338, %v1406
      %v1439 = vadd.f32 %v1339, %v1407
      %v1440 = vadd.f32 %v1340, %v1408
      %v1441 = vadd.f32 %v1341, %v1409
      %v1442 = vadd.f32 %v1342, %v1410
      %v1443 = vadd.f32 %v1343, %v1411
      %v1444 = vadd.f32 %v1344, %v1412
      %v1445 = vadd.f32 %v1345, %v1413
      %v1446 = vadd.f32 %v1346, %v1414
      %v1447 = vadd.f32 %v1347, %v1415
      %v1448 = vadd.f32 %v1348, %v1416
      %v1449 = vadd.f32 %v1349, %v1417
      %v1450 = vadd.f32 %v1350, %v1418
      %v1451 = vadd.f32 %v1351, %v1419
      %v1452 = vadd.f32 %v1352, %v1420
      %v1453 = vadd.f32 %v1353, %v1421
      %v1454 = vadd.f32 %v1354, %v1422
      %v1455 = vadd.f32 %v1355, %v1423
      %v1456 = vadd.f32 %v1356, %v1424
      %v1457 = vadd.f32 %v1357, %v1425
      %v1458 = vadd.f32 %v1358, %v1426
      %v1459 = vadd.f32 %v1359, %v1427
      %v1460 = vadd.f32 %v1360, %v1428
      %v1461 = vld [vmem:[%s1260 + $0x2] sm:$0xff]
      %v1462 = vld [vmem:[%s1260 + $0xa] sm:$0xff]
      %v1463 = vld [vmem:[%s1260 + $0x1a] sm:$0xff]
      %v1464 = vld [vmem:[%s1260 + $0x22] sm:$0xff]
      %v1465 = vld [vmem:[%s1260 + $0x32] sm:$0xff]
      %v1466 = vld [vmem:[%s1260 + $0x3a] sm:$0xff]
      %v1467 = vld [vmem:[%s1260 + $0x4a] sm:$0xff]
      %v1468 = vld [vmem:[%s1260 + $0x52] sm:$0xff]
      %v1469 = vld [vmem:[%s1260 + $0x62] sm:$0xff]
      %v1470 = vld [vmem:[%s1260 + $0x6a] sm:$0xff]
      %v1471 = vld [vmem:[%s1260 + $0x7a] sm:$0xff]
      %v1472 = vld [vmem:[%s1260 + $0x82] sm:$0xff]
      %v1473 = vld [vmem:[%s1260 + $0x92] sm:$0xff]
      %v1474 = vld [vmem:[%s1260 + $0x9a] sm:$0xff]
      %v1475 = vld [vmem:[%s1260 + $0xaa] sm:$0xff]
      %v1476 = vld [vmem:[%s1260 + $0xb2] sm:$0xff]
      %v1477 = vld [vmem:[%s1260 + $0xc2] sm:$0xff]
      %v1478 = vld [vmem:[%s1260 + $0xca] sm:$0xff]
      %v1479 = vld [vmem:[%s1260 + $0xda] sm:$0xff]
      %v1480 = vld [vmem:[%s1260 + $0xe2] sm:$0xff]
      %v1481 = vld [vmem:[%s1260 + $0xf2] sm:$0xff]
      %v1482 = vld [vmem:[%s1260 + $0xfa] sm:$0xff]
      %v1483 = vld [vmem:[%s1260 + $0x10a] sm:$0xff]
      %v1484 = vld [vmem:[%s1260 + $0x112] sm:$0xff]
      %v1485 = vld [vmem:[%s1260 + $0x122] sm:$0xff]
      %v1486 = vld [vmem:[%s1260 + $0x12a] sm:$0xff]
      %v1487 = vld [vmem:[%s1260 + $0x13a] sm:$0xff]
      %v1488 = vld [vmem:[%s1260 + $0x142] sm:$0xff]
      %v1489 = vld [vmem:[%s1260 + $0x152] sm:$0xff]
      %v1490 = vld [vmem:[%s1260 + $0x15a] sm:$0xff]
      %v1491 = vld [vmem:[%s1260 + $0x16a] sm:$0xff]
      %v1492 = vld [vmem:[%s1260 + $0x172] sm:$0xff]
      %v1493 = vlaneseq
      %v1494 = vshrl.u32 %v1493, 7
      %v1495 = vsub.s32 2, %v1494
      %v1496 = vrot.slane %v691, %v1495
      %v1497 = vmul.f32 %v1461, %v1496
      %v1498 = vmul.f32 %v1462, %v1496
      %v1499 = vmul.f32 %v1463, %v1496
      %v1500 = vmul.f32 %v1464, %v1496
      %v1501 = vmul.f32 %v1465, %v1496
      %v1502 = vmul.f32 %v1466, %v1496
      %v1503 = vmul.f32 %v1467, %v1496
      %v1504 = vmul.f32 %v1468, %v1496
      %v1505 = vmul.f32 %v1469, %v1496
      %v1506 = vmul.f32 %v1470, %v1496
      %v1507 = vmul.f32 %v1471, %v1496
      %v1508 = vmul.f32 %v1472, %v1496
      %v1509 = vmul.f32 %v1473, %v1496
      %v1510 = vmul.f32 %v1474, %v1496
      %v1511 = vmul.f32 %v1475, %v1496
      %v1512 = vmul.f32 %v1476, %v1496
      %v1513 = vmul.f32 %v1477, %v1496
      %v1514 = vmul.f32 %v1478, %v1496
      %v1515 = vmul.f32 %v1479, %v1496
      %v1516 = vmul.f32 %v1480, %v1496
      %v1517 = vmul.f32 %v1481, %v1496
      %v1518 = vmul.f32 %v1482, %v1496
      %v1519 = vmul.f32 %v1483, %v1496
      %v1520 = vmul.f32 %v1484, %v1496
      %v1521 = vmul.f32 %v1485, %v1496
      %v1522 = vmul.f32 %v1486, %v1496
      %v1523 = vmul.f32 %v1487, %v1496
      %v1524 = vmul.f32 %v1488, %v1496
      %v1525 = vmul.f32 %v1489, %v1496
      %v1526 = vmul.f32 %v1490, %v1496
      %v1527 = vmul.f32 %v1491, %v1496
      %v1528 = vmul.f32 %v1492, %v1496
      %v1529 = vadd.f32 %v1429, %v1497
      %v1530 = vadd.f32 %v1430, %v1498
      %v1531 = vadd.f32 %v1431, %v1499
      %v1532 = vadd.f32 %v1432, %v1500
      %v1533 = vadd.f32 %v1433, %v1501
      %v1534 = vadd.f32 %v1434, %v1502
      %v1535 = vadd.f32 %v1435, %v1503
      %v1536 = vadd.f32 %v1436, %v1504
      %v1537 = vadd.f32 %v1437, %v1505
      %v1538 = vadd.f32 %v1438, %v1506
      %v1539 = vadd.f32 %v1439, %v1507
      %v1540 = vadd.f32 %v1440, %v1508
      %v1541 = vadd.f32 %v1441, %v1509
      %v1542 = vadd.f32 %v1442, %v1510
      %v1543 = vadd.f32 %v1443, %v1511
      %v1544 = vadd.f32 %v1444, %v1512
      %v1545 = vadd.f32 %v1445, %v1513
      %v1546 = vadd.f32 %v1446, %v1514
      %v1547 = vadd.f32 %v1447, %v1515
      %v1548 = vadd.f32 %v1448, %v1516
      %v1549 = vadd.f32 %v1449, %v1517
      %v1550 = vadd.f32 %v1450, %v1518
      %v1551 = vadd.f32 %v1451, %v1519
      %v1552 = vadd.f32 %v1452, %v1520
      %v1553 = vadd.f32 %v1453, %v1521
      %v1554 = vadd.f32 %v1454, %v1522
      %v1555 = vadd.f32 %v1455, %v1523
      %v1556 = vadd.f32 %v1456, %v1524
      %v1557 = vadd.f32 %v1457, %v1525
      %v1558 = vadd.f32 %v1458, %v1526
      %v1559 = vadd.f32 %v1459, %v1527
      %v1560 = vadd.f32 %v1460, %v1528
      %v1561 = vld [vmem:[%s4] sm:$0x1]
      %v1563 = vlaneseq
      %v1564 = vshrl.u32 %v1563, 7
      %v1565 = vsub.s32 0, %v1564
      %v1566 = vrot.slane %v1561, %v1565
      %v1568 = vadd.f32 %v1529, %v1566
      %v1569 = vadd.f32 %v1530, %v1566
      %v1570 = vadd.f32 %v1531, %v1566
      %v1571 = vadd.f32 %v1532, %v1566
      %v1572 = vadd.f32 %v1533, %v1566
      %v1573 = vadd.f32 %v1534, %v1566
      %v1574 = vadd.f32 %v1535, %v1566
      %v1575 = vadd.f32 %v1536, %v1566
      %v1576 = vadd.f32 %v1537, %v1566
      %v1577 = vadd.f32 %v1538, %v1566
      %v1578 = vadd.f32 %v1539, %v1566
      %v1579 = vadd.f32 %v1540, %v1566
      %v1580 = vadd.f32 %v1541, %v1566
      %v1581 = vadd.f32 %v1542, %v1566
      %v1582 = vadd.f32 %v1543, %v1566
      %v1583 = vadd.f32 %v1544, %v1566
      %v1584 = vadd.f32 %v1545, %v1566
      %v1585 = vadd.f32 %v1546, %v1566
      %v1586 = vadd.f32 %v1547, %v1566
      %v1587 = vadd.f32 %v1548, %v1566
      %v1588 = vadd.f32 %v1549, %v1566
      %v1589 = vadd.f32 %v1550, %v1566
      %v1590 = vadd.f32 %v1551, %v1566
      %v1591 = vadd.f32 %v1552, %v1566
      %v1592 = vadd.f32 %v1553, %v1566
      %v1593 = vadd.f32 %v1554, %v1566
      %v1594 = vadd.f32 %v1555, %v1566
      %v1595 = vadd.f32 %v1556, %v1566
      %v1596 = vadd.f32 %v1557, %v1566
      %v1597 = vadd.f32 %v1558, %v1566
      %v1598 = vadd.f32 %v1559, %v1566
      %v1599 = vadd.f32 %v1560, %v1566
      %v1600 = vmax.f32 %v1568, 0.0
      %v1601 = vmax.f32 %v1569, 0.0
      %v1602 = vmax.f32 %v1570, 0.0
      %v1603 = vmax.f32 %v1571, 0.0
      %v1604 = vmax.f32 %v1572, 0.0
      %v1605 = vmax.f32 %v1573, 0.0
      %v1606 = vmax.f32 %v1574, 0.0
      %v1607 = vmax.f32 %v1575, 0.0
      %v1608 = vmax.f32 %v1576, 0.0
      %v1609 = vmax.f32 %v1577, 0.0
      %v1610 = vmax.f32 %v1578, 0.0
      %v1611 = vmax.f32 %v1579, 0.0
      %v1612 = vmax.f32 %v1580, 0.0
      %v1613 = vmax.f32 %v1581, 0.0
      %v1614 = vmax.f32 %v1582, 0.0
      %v1615 = vmax.f32 %v1583, 0.0
      %v1616 = vmax.f32 %v1584, 0.0
      %v1617 = vmax.f32 %v1585, 0.0
      %v1618 = vmax.f32 %v1586, 0.0
      %v1619 = vmax.f32 %v1587, 0.0
      %v1620 = vmax.f32 %v1588, 0.0
      %v1621 = vmax.f32 %v1589, 0.0
      %v1622 = vmax.f32 %v1590, 0.0
      %v1623 = vmax.f32 %v1591, 0.0
      %v1624 = vmax.f32 %v1592, 0.0
      %v1625 = vmax.f32 %v1593, 0.0
      %v1626 = vmax.f32 %v1594, 0.0
      %v1627 = vmax.f32 %v1595, 0.0
      %v1628 = vmax.f32 %v1596, 0.0
      %v1629 = vmax.f32 %v1597, 0.0
      %v1630 = vmax.f32 %v1598, 0.0
      %v1631 = vmax.f32 %v1599, 0.0
      %v1632 = vmin.f32 %v1600, 6.0
      %v1633 = vmin.f32 %v1601, 6.0
      %v1634 = vmin.f32 %v1602, 6.0
      %v1635 = vmin.f32 %v1603, 6.0
      %v1636 = vmin.f32 %v1604, 6.0
      %v1637 = vmin.f32 %v1605, 6.0
      %v1638 = vmin.f32 %v1606, 6.0
      %v1639 = vmin.f32 %v1607, 6.0
      %v1640 = vmin.f32 %v1608, 6.0
      %v1641 = vmin.f32 %v1609, 6.0
      %v1642 = vmin.f32 %v1610, 6.0
      %v1643 = vmin.f32 %v1611, 6.0
      %v1644 = vmin.f32 %v1612, 6.0
      %v1645 = vmin.f32 %v1613, 6.0
      %v1646 = vmin.f32 %v1614, 6.0
      %v1647 = vmin.f32 %v1615, 6.0
      %v1648 = vmin.f32 %v1616, 6.0
      %v1649 = vmin.f32 %v1617, 6.0
      %v1650 = vmin.f32 %v1618, 6.0
      %v1651 = vmin.f32 %v1619, 6.0
      %v1652 = vmin.f32 %v1620, 6.0
      %v1653 = vmin.f32 %v1621, 6.0
      %v1654 = vmin.f32 %v1622, 6.0
      %v1655 = vmin.f32 %v1623, 6.0
      %v1656 = vmin.f32 %v1624, 6.0
      %v1657 = vmin.f32 %v1625, 6.0
      %v1658 = vmin.f32 %v1626, 6.0
      %v1659 = vmin.f32 %v1627, 6.0
      %v1660 = vmin.f32 %v1628, 6.0
      %v1661 = vmin.f32 %v1629, 6.0
      %v1662 = vmin.f32 %v1630, 6.0
      %v1663 = vmin.f32 %v1631, 6.0
      %v1664 = vpack.c.bf16 %v1633, %v1632
      %v1665 = vpack.c.bf16 %v1635, %v1634
      %v1666 = vpack.c.bf16 %v1637, %v1636
      %v1667 = vpack.c.bf16 %v1639, %v1638
      %v1668 = vpack.c.bf16 %v1641, %v1640
      %v1669 = vpack.c.bf16 %v1643, %v1642
      %v1670 = vpack.c.bf16 %v1645, %v1644
      %v1671 = vpack.c.bf16 %v1647, %v1646
      %v1672 = vpack.c.bf16 %v1649, %v1648
      %v1673 = vpack.c.bf16 %v1651, %v1650
      %v1674 = vpack.c.bf16 %v1653, %v1652
      %v1675 = vpack.c.bf16 %v1655, %v1654
      %v1676 = vpack.c.bf16 %v1657, %v1656
      %v1677 = vpack.c.bf16 %v1659, %v1658
      %v1678 = vpack.c.bf16 %v1661, %v1660
      %v1679 = vpack.c.bf16 %v1663, %v1662
      %v1680 = vld [vmem:[%s5] sm:$0xf]
      %v1681 = vld [vmem:[%s5 + $0x4] sm:$0xf]
      %v1682 = vld [vmem:[%s5 + $0x8] sm:$0xf]
      %v1683 = vld [vmem:[%s6] sm:$0x1]
      %v1685 = vlaneseq
      %v1686 = vshrl.u32 %v1685, 7
      %v1687 = vsub.s32 0, %v1686
      %v1688 = vrot.slane %v1683, %v1687
      %v1693 = vunpack.c.l.b16 %v1680
      %v1694 = vunpack.c.l.b16 %v1681
      %v1695 = vunpack.c.l.b16 %v1682
      %v1696 = vpack.c.b16 %v1694, %v1693
      %v1697 = vpack.c.b16 %v1695, %v1695
      %v1700 = vsel %vm614, %v1664, 0
      %v1703 = vsel %vm614, %v1665, 0
      %v1706 = vsel %vm614, %v1666, 0
      %v1709 = vsel %vm614, %v1667, 0
      %v1712 = vsel %vm614, %v1668, 0
      %v1715 = vsel %vm614, %v1669, 0
      %v1718 = vsel %vm614, %v1670, 0
      %v1721 = vsel %vm614, %v1671, 0
      %v1724 = vsel %vm614, %v1672, 0
      %v1727 = vsel %vm614, %v1673, 0
      %v1730 = vsel %vm614, %v1674, 0
      %v1733 = vsel %vm614, %v1675, 0
      %v1736 = vsel %vm614, %v1676, 0
      %v1739 = vsel %vm614, %v1677, 0
      %v1742 = vsel %vm614, %v1678, 0
      %v1745 = vsel %vm614, %v1679, 0
      %vm1747 = vcmask 1043456
      %v1749 = vsel %vm1747, %v1697, 0
      %1751 = vmatprep.subr.bf16.mxu0 0
      %1752 = vmatpush1.bf16.msra.mxu0 %v1696
      %1753 = vmatprep.subr.bf16.mxu0 0
      %1754 = vmatpush1.bf16.msra.mxu0 %v1749
      %1755 = vmatprep.subr.bf16.mxu0 0
      %1756 = vmatpush1.bf16.msra.mxu0 0
      %1757 = vmatprep.subr.bf16.mxu0 0
      %1758 = vmatpush1.bf16.msra.mxu0 0
      %1759 = vmatprep.subr.bf16.mxu0 0
      %1760 = vmatpush1.bf16.msra.mxu0 0
      %1761 = vmatprep.subr.bf16.mxu0 0
      %1762 = vmatpush1.bf16.msra.mxu0 0
      %1763 = vmatprep.subr.bf16.mxu0 0
      %1764 = vmatpush1.bf16.msra.mxu0 0
      %1765 = vmatprep.subr.bf16.mxu0 0
      %1766 = vmatpush1.bf16.msra.mxu0 0
      %1767 = vmatprep.subr.bf16.mxu0 0
      %1768 = vmatpush1.bf16.msra.mxu0 0
      %1769 = vmatprep.subr.bf16.mxu0 0
      %1770 = vmatpush1.bf16.msra.mxu0 0
      %1771 = vmatprep.subr.bf16.mxu0 0
      %1772 = vmatpush1.bf16.msra.mxu0 0
      %1773 = vmatprep.subr.bf16.mxu0 0
      %1774 = vmatpush1.bf16.msra.mxu0 0
      %1775 = vmatprep.subr.bf16.mxu0 0
      %1776 = vmatpush1.bf16.msra.mxu0 0
      %1777 = vmatprep.subr.bf16.mxu0 0
      %1778 = vmatpush1.bf16.msra.mxu0 0
      %1779 = vmatprep.subr.bf16.mxu0 0
      %1780 = vmatpush1.bf16.msra.mxu0 0
      %1781 = vmatprep.subr.bf16.mxu0 0
      %1782 = vmatpush1.bf16.msra.mxu0 0
      %1783 = vmatprep.mubr.bf16.mxu0 0
      %1784 = vmatmul.mubr.bf16.gmra.mrb[0].mxu0 %v1700
      %v1785 = vpop.f32.mrb[0].mxu0
      %v1786 = vadd.f32 %v1688, %v1785
      %v1787 = vpop.f32.mrb[0].mxu0
      %v1788 = vpop.f32.mrb[0].mxu0
      %v1789 = vadd.f32 %v1688, %v1788
      %v1790 = vpop.f32.mrb[0].mxu0
      %1791 = vmatprep.mubr.bf16.mxu0 0
      %1792 = vmatmul.mubr.bf16.gmra.mrb[0].mxu0 %v1703
      %v1793 = vpop.f32.mrb[0].mxu0
      %v1794 = vadd.f32 %v1688, %v1793
      %v1795 = vpop.f32.mrb[0].mxu0
      %v1796 = vpop.f32.mrb[0].mxu0
      %v1797 = vadd.f32 %v1688, %v1796
      %v1798 = vpop.f32.mrb[0].mxu0
      %1799 = vmatprep.mubr.bf16.mxu0 0
      %1800 = vmatmul.mubr.bf16.gmra.mrb[0].mxu0 %v1706
      %v1801 = vpop.f32.mrb[0].mxu0
      %v1802 = vadd.f32 %v1688, %v1801
      %v1803 = vpop.f32.mrb[0].mxu0
      %v1804 = vpop.f32.mrb[0].mxu0
      %v1805 = vadd.f32 %v1688, %v1804
      %v1806 = vpop.f32.mrb[0].mxu0
      %1807 = vmatprep.mubr.bf16.mxu0 0
      %1808 = vmatmul.mubr.bf16.gmra.mrb[0].mxu0 %v1709
      %v1809 = vpop.f32.mrb[0].mxu0
      %v1810 = vadd.f32 %v1688, %v1809
      %v1811 = vpop.f32.mrb[0].mxu0
      %v1812 = vpop.f32.mrb[0].mxu0
      %v1813 = vadd.f32 %v1688, %v1812
      %v1814 = vpop.f32.mrb[0].mxu0
      %1815 = vmatprep.mubr.bf16.mxu0 0
      %1816 = vmatmul.mubr.bf16.gmra.mrb[0].mxu0 %v1712
      %v1817 = vpop.f32.mrb[0].mxu0
      %v1818 = vadd.f32 %v1688, %v1817
      %v1819 = vpop.f32.mrb[0].mxu0
      %v1820 = vpop.f32.mrb[0].mxu0
      %v1821 = vadd.f32 %v1688, %v1820
      %v1822 = vpop.f32.mrb[0].mxu0
      %1823 = vmatprep.mubr.bf16.mxu0 0
      %1824 = vmatmul.mubr.bf16.gmra.mrb[0].mxu0 %v1715
      %v1825 = vpop.f32.mrb[0].mxu0
      %v1826 = vadd.f32 %v1688, %v1825
      %v1827 = vpop.f32.mrb[0].mxu0
      %v1828 = vpop.f32.mrb[0].mxu0
      %v1829 = vadd.f32 %v1688, %v1828
      %v1830 = vpop.f32.mrb[0].mxu0
      %1831 = vmatprep.mubr.bf16.mxu0 0
      %1832 = vmatmul.mubr.bf16.gmra.mrb[0].mxu0 %v1718
      %v1833 = vpop.f32.mrb[0].mxu0
      %v1834 = vadd.f32 %v1688, %v1833
      %v1835 = vpop.f32.mrb[0].mxu0
      %v1836 = vpop.f32.mrb[0].mxu0
      %v1837 = vadd.f32 %v1688, %v1836
      %v1838 = vpop.f32.mrb[0].mxu0
      %1839 = vmatprep.mubr.bf16.mxu0 0
      %1840 = vmatmul.mubr.bf16.gmra.mrb[0].mxu0 %v1721
      %v1841 = vpop.f32.mrb[0].mxu0
      %v1842 = vadd.f32 %v1688, %v1841
      %v1843 = vpop.f32.mrb[0].mxu0
      %v1844 = vpop.f32.mrb[0].mxu0
      %v1845 = vadd.f32 %v1688, %v1844
      %v1846 = vpop.f32.mrb[0].mxu0
      %1847 = vmatprep.mubr.bf16.mxu0 0
      %1848 = vmatmul.mubr.bf16.gmra.mrb[0].mxu0 %v1724
      %v1849 = vpop.f32.mrb[0].mxu0
      %v1850 = vadd.f32 %v1688, %v1849
      %v1851 = vpop.f32.mrb[0].mxu0
      %v1852 = vpop.f32.mrb[0].mxu0
      %v1853 = vadd.f32 %v1688, %v1852
      %v1854 = vpop.f32.mrb[0].mxu0
      %1855 = vmatprep.mubr.bf16.mxu0 0
      %1856 = vmatmul.mubr.bf16.gmra.mrb[0].mxu0 %v1727
      %v1857 = vpop.f32.mrb[0].mxu0
      %v1858 = vadd.f32 %v1688, %v1857
      %v1859 = vpop.f32.mrb[0].mxu0
      %v1860 = vpop.f32.mrb[0].mxu0
      %v1861 = vadd.f32 %v1688, %v1860
      %v1862 = vpop.f32.mrb[0].mxu0
      %1863 = vmatprep.mubr.bf16.mxu0 0
      %1864 = vmatmul.mubr.bf16.gmra.mrb[0].mxu0 %v1730
      %v1865 = vpop.f32.mrb[0].mxu0
      %v1866 = vadd.f32 %v1688, %v1865
      %v1867 = vpop.f32.mrb[0].mxu0
      %v1868 = vpop.f32.mrb[0].mxu0
      %v1869 = vadd.f32 %v1688, %v1868
      %v1870 = vpop.f32.mrb[0].mxu0
      %1871 = vmatprep.mubr.bf16.mxu0 0
      %1872 = vmatmul.mubr.bf16.gmra.mrb[0].mxu0 %v1733
      %v1873 = vpop.f32.mrb[0].mxu0
      %v1874 = vadd.f32 %v1688, %v1873
      %v1875 = vpop.f32.mrb[0].mxu0
      %v1876 = vpop.f32.mrb[0].mxu0
      %v1877 = vadd.f32 %v1688, %v1876
      %v1878 = vpop.f32.mrb[0].mxu0
      %1879 = vmatprep.mubr.bf16.mxu0 0
      %1880 = vmatmul.mubr.bf16.gmra.mrb[0].mxu0 %v1736
      %v1881 = vpop.f32.mrb[0].mxu0
      %v1882 = vadd.f32 %v1688, %v1881
      %v1883 = vpop.f32.mrb[0].mxu0
      %v1884 = vpop.f32.mrb[0].mxu0
      %v1885 = vadd.f32 %v1688, %v1884
      %v1886 = vpop.f32.mrb[0].mxu0
      %1887 = vmatprep.mubr.bf16.mxu0 0
      %1888 = vmatmul.mubr.bf16.gmra.mrb[0].mxu0 %v1739
      %v1889 = vpop.f32.mrb[0].mxu0
      %v1890 = vadd.f32 %v1688, %v1889
      %v1891 = vpop.f32.mrb[0].mxu0
      %v1892 = vpop.f32.mrb[0].mxu0
      %v1893 = vadd.f32 %v1688, %v1892
      %v1894 = vpop.f32.mrb[0].mxu0
      %1895 = vmatprep.mubr.bf16.mxu0 0
      %1896 = vmatmul.mubr.bf16.gmra.mrb[0].mxu0 %v1742
      %v1897 = vpop.f32.mrb[0].mxu0
      %v1898 = vadd.f32 %v1688, %v1897
      %v1899 = vpop.f32.mrb[0].mxu0
      %v1900 = vpop.f32.mrb[0].mxu0
      %v1901 = vadd.f32 %v1688, %v1900
      %v1902 = vpop.f32.mrb[0].mxu0
      %1903 = vmatprep.mubr.bf16.mxu0 0
      %1904 = vmatmul.mubr.bf16.gmra.mrb[0].mxu0 %v1745
      %v1905 = vpop.f32.mrb[0].mxu0
      %v1906 = vadd.f32 %v1688, %v1905
      %v1907 = vpop.f32.mrb[0].mxu0
      %v1908 = vpop.f32.mrb[0].mxu0
      %v1909 = vadd.f32 %v1688, %v1908
      %v1910 = vpop.f32.mrb[0].mxu0
      %1911 = vdwg.mxu0
      %v1912 = vadd.f32 %v1786, %v280
      %v1913 = vadd.f32 %v1789, %v281
      %v1914 = vadd.f32 %v1794, %v282
      %v1915 = vadd.f32 %v1797, %v283
      %v1916 = vadd.f32 %v1802, %v284
      %v1917 = vadd.f32 %v1805, %v285
      %v1918 = vadd.f32 %v1810, %v286
      %v1919 = vadd.f32 %v1813, %v287
      %v1920 = vadd.f32 %v1818, %v288
      %v1921 = vadd.f32 %v1821, %v289
      %v1922 = vadd.f32 %v1826, %v290
      %v1923 = vadd.f32 %v1829, %v291
      %v1924 = vadd.f32 %v1834, %v292
      %v1925 = vadd.f32 %v1837, %v293
      %v1926 = vadd.f32 %v1842, %v294
      %v1927 = vadd.f32 %v1845, %v295
      %v1928 = vadd.f32 %v1850, %v296
      %v1929 = vadd.f32 %v1853, %v297
      %v1930 = vadd.f32 %v1858, %v298
      %v1931 = vadd.f32 %v1861, %v299
      %v1932 = vadd.f32 %v1866, %v300
      %v1933 = vadd.f32 %v1869, %v301
      %v1934 = vadd.f32 %v1874, %v302
      %v1935 = vadd.f32 %v1877, %v303
      %v1936 = vadd.f32 %v1882, %v304
      %v1937 = vadd.f32 %v1885, %v305
      %v1938 = vadd.f32 %v1890, %v306
      %v1939 = vadd.f32 %v1893, %v307
      %v1940 = vadd.f32 %v1898, %v308
      %v1941 = vadd.f32 %v1901, %v309
      %v1942 = vadd.f32 %v1906, %v310
      %v1943 = vadd.f32 %v1909, %v311
      %1944 = vst.msk [vmem:[%s278] sm:$0xff] %vm336, %v1912
      %1945 = vst.msk [vmem:[%s278 + $0x8] sm:$0xff] %vm336, %v1913
      %1946 = vst.msk [vmem:[%s278 + $0x10] sm:$0xff] %vm336, %v1914
      %1947 = vst.msk [vmem:[%s278 + $0x18] sm:$0xff] %vm336, %v1915
      %1948 = vst.msk [vmem:[%s278 + $0x20] sm:$0xff] %vm336, %v1916
      %1949 = vst.msk [vmem:[%s278 + $0x28] sm:$0xff] %vm336, %v1917
      %1950 = vst.msk [vmem:[%s278 + $0x30] sm:$0xff] %vm336, %v1918
      %1951 = vst.msk [vmem:[%s278 + $0x38] sm:$0xff] %vm336, %v1919
      %1952 = vst.msk [vmem:[%s278 + $0x40] sm:$0xff] %vm336, %v1920
      %1953 = vst.msk [vmem:[%s278 + $0x48] sm:$0xff] %vm336, %v1921
      %1954 = vst.msk [vmem:[%s278 + $0x50] sm:$0xff] %vm336, %v1922
      %1955 = vst.msk [vmem:[%s278 + $0x58] sm:$0xff] %vm336, %v1923
      %1956 = vst.msk [vmem:[%s278 + $0x60] sm:$0xff] %vm336, %v1924
      %1957 = vst.msk [vmem:[%s278 + $0x68] sm:$0xff] %vm336, %v1925
      %1958 = vst.msk [vmem:[%s278 + $0x70] sm:$0xff] %vm336, %v1926
      %1959 = vst.msk [vmem:[%s278 + $0x78] sm:$0xff] %vm336, %v1927
      %1960 = vst.msk [vmem:[%s278 + $0x80] sm:$0xff] %vm336, %v1928
      %1961 = vst.msk [vmem:[%s278 + $0x88] sm:$0xff] %vm336, %v1929
      %1962 = vst.msk [vmem:[%s278 + $0x90] sm:$0xff] %vm336, %v1930
      %1963 = vst.msk [vmem:[%s278 + $0x98] sm:$0xff] %vm336, %v1931
      %1964 = vst.msk [vmem:[%s278 + $0xa0] sm:$0xff] %vm336, %v1932
      %1965 = vst.msk [vmem:[%s278 + $0xa8] sm:$0xff] %vm336, %v1933
      %1966 = vst.msk [vmem:[%s278 + $0xb0] sm:$0xff] %vm336, %v1934
      %1967 = vst.msk [vmem:[%s278 + $0xb8] sm:$0xff] %vm336, %v1935
      %1968 = vst.msk [vmem:[%s278 + $0xc0] sm:$0xff] %vm336, %v1936
      %1969 = vst.msk [vmem:[%s278 + $0xc8] sm:$0xff] %vm336, %v1937
      %1970 = vst.msk [vmem:[%s278 + $0xd0] sm:$0xff] %vm336, %v1938
      %1971 = vst.msk [vmem:[%s278 + $0xd8] sm:$0xff] %vm336, %v1939
      %1972 = vst.msk [vmem:[%s278 + $0xe0] sm:$0xff] %vm336, %v1940
      %1973 = vst.msk [vmem:[%s278 + $0xe8] sm:$0xff] %vm336, %v1941
      %1974 = vst.msk [vmem:[%s278 + $0xf0] sm:$0xff] %vm336, %v1942
      %1975 = vst.msk [vmem:[%s278 + $0xf8] sm:$0xff] %vm336, %v1943
      %p1976 = scmp.lt.s32.totalorder %s18, 1
      %s1977 = scalar_select %p1976, %s18, 1
      %s1978 = smul.addr %s1977, 32
      %s1979 = smul.addr %s1978, 8
      %s1980 = scalar_lea.vmem %s7, %s1979
      // Predicated region
      $region49: #{tpu_custom_call.1} parent=47 // pred_check
        %p1981 = pneg %p188
      $region50: #{tpu_custom_call.1} parent=47 // pred_check_branch
        %1983 = sbr.rel (%p1981) target = $region52
      $region51: #{tpu_custom_call.1} parent=47 // pred_region
        _
      $region52: #{tpu_custom_call.1} parent=47 // pred_fallthru
        _
    $region48: #{tpu_custom_call.1} parent=5 // pred_fallthru
      _
    %p1984 = scmp.le.s32.totalorder 2, %s13
    // Predicated region
    $region53: #{tpu_custom_call.1} parent=5 // pred_check
      %p1985 = pneg %p1984
    $region54: #{tpu_custom_call.1} parent=5 // pred_check_branch
      %1987 = sbr.rel (%p1985) target = $region56
    $region55: #{tpu_custom_call.1} parent=5 // pred_region
      %s1988 = ssub.s32 %s13, 2
      // Predicated region
      $region57: #{tpu_custom_call.1} parent=55 // pred_check
        %p1989 = pneg %p194
      $region58: #{tpu_custom_call.1} parent=55 // pred_check_branch
        %1991 = sbr.rel (%p1989) target = $region60
      $region59: #{tpu_custom_call.1} parent=55 // pred_region
        %p1992 = scmp.lt.s32.totalorder %s19, 1
        %s1993 = scalar_select %p1992, %s19, 1
        %s1994 = smul.addr %s1993, 32
        %s1995 = smul.addr %s1994, 8
        %s1996 = scalar_lea.vmem %s7, %s1995
      $region60: #{tpu_custom_call.1} parent=55 // pred_fallthru
        _
    $region56: #{tpu_custom_call.1} parent=5 // pred_fallthru
      _
  $region6: #{tpu_custom_call.1} parent=0 // loop_footer
    %s17 = sadd.s32 1, %s13
  $region7: #{tpu_custom_call.1} parent=0 // loop_footer_branch
    %12 = sbr.rel target = $region3
  $region8: #{tpu_custom_call.1} parent=0 // loop_exit
    _

</llo_original>
